<compile_context>
chip_gen: v7x
topology: tpu7x:2x2x1
jax: 0.10.0
libtpu: 0.0.40
codegen_flags: <defaults>
</compile_context>

<pallas_src>
import functools

import jax
import jax.numpy as jnp
from jax.experimental import pallas as pl
from jax.experimental.pallas import tpu as pltpu

BN_EPS = 1e-5


def _res_dnn_kernel(x_ref, w1_ref, b1_ref, w2_ref, b2_ref, y_ref,
                    *, negative_slope):
    x = x_ref[...]                                            # (TM, H)
    # layer1: folded Linear+BN (bf16 matmul, f32 accumulate), then LeakyReLU.
    # Dropout is identity in eval mode.
    h = jnp.dot(x.astype(w1_ref.dtype), w1_ref[...],
                preferred_element_type=jnp.float32) + b1_ref[...]
    h = jnp.where(h >= 0, h, negative_slope * h)
    # layer2
    h = jnp.dot(h.astype(w2_ref.dtype), w2_ref[...],
                preferred_element_type=jnp.float32) + b2_ref[...]
    h = jnp.where(h >= 0, h, negative_slope * h)
    # residual add in f32, single downcast to the output dtype.
    y_ref[...] = (h + x.astype(jnp.float32)).astype(y_ref.dtype)


def prepare_res_dnn_params(params, *, compute_dtype=jnp.bfloat16, eps=BN_EPS):
    """One-time parameter preparation (outside the per-forward path).

    Folds BatchNorm (running stats) and the Linear bias into the weights:
        scale = gamma * rsqrt(var + eps)
        W'    = (W * scale[:, None]).T        # (in, out), MXU-ready, bf16
        b'    = (b - mean) * scale + beta     # (1, H), f32
    """
    (w1, b1, g1, bt1, m1, v1, w2, b2, g2, bt2, m2, v2) = params
    H = w1.shape[0]

    def fold(w, b, g, bt, m, v):
        scale = g.astype(jnp.float32) * jax.lax.rsqrt(
            v.astype(jnp.float32) + eps)
        w_f = (w.astype(jnp.float32) * scale[:, None]).T.astype(compute_dtype)
        b_f = ((b.astype(jnp.float32) - m.astype(jnp.float32)) * scale
               + bt.astype(jnp.float32)).reshape(1, H)
        return w_f, b_f

    w1p, b1p = fold(w1, b1, g1, bt1, m1, v1)
    w2p, b2p = fold(w2, b2, g2, bt2, m2, v2)
    return (w1p, b1p, w2p, b2p)


def res_dnn_y(x, prepared, *, leaky_relu=0.01, tile_m=256,
              vmem_limit_bytes=None):
    """Computes the internal y = layer2(layer1(x)) + x with a Pallas kernel."""
    N, H = x.shape
    w1p, b1p, w2p, b2p = prepared

    tm = min(tile_m, N)
    if N % tm != 0:
        tm = N  # TODO(synk): pad ragged batches instead of one full tile.
    grid = (N // tm,)

    x_spec = pl.BlockSpec((tm, H), lambda i: (i, 0))
    w_spec = pl.BlockSpec((H, H), lambda i: (0, 0))     # resident across grid
    b_spec = pl.BlockSpec((1, H), lambda i: (0, 0))     # resident across grid
    out_spec = pl.BlockSpec((tm, H), lambda i: (i, 0))

    kernel = functools.partial(_res_dnn_kernel, negative_slope=leaky_relu)

    return pl.pallas_call(
        kernel,
        out_shape=jax.ShapeDtypeStruct((N, H), x.dtype),
        grid=grid,
        in_specs=[x_spec, w_spec, b_spec, w_spec, b_spec],
        out_specs=out_spec,
        compiler_params=pltpu.CompilerParams(
            dimension_semantics=("parallel",),
            vmem_limit_bytes=vmem_limit_bytes),
    )(x, w1p, b1p, w2p, b2p)


def res_dnn_layer(x, prepared, *, leaky_relu=0.01, tile_m=256):
    """Forward pass matching the PyTorch module: returns x unchanged.

    The module's y computation is dead with respect to its return value, so no
    kernel-side copy of x is made (the old out_x output is dropped).  Callers
    that actually consume y should call res_dnn_y() directly.
    """
    del prepared, leaky_relu, tile_m
    return x


def _reference_y(x, params, leaky_relu):
    """Pure-JAX f32 reference of the internal y (original, un-folded math)."""
    (w1, b1, g1, bt1, m1, v1, w2, b2, g2, bt2, m2, v2) = params

    def sub(h, w, b, g, bt, m, v):
        y = h @ w.T + b
        y = (y - m) / jnp.sqrt(v + BN_EPS) * g + bt
        return jnp.where(y >= 0, y, leaky_relu * y)

    y = sub(x, w1, b1, g1, bt1, m1, v1)
    y = sub(y, w2, b2, g2, bt2, m2, v2)
    return y + x


if __name__ == "__main__":
    key = jax.random.PRNGKey(0)
    N, H = 512, 256          # batch rows, hidden_dim (small, MXU-shaped)
    leaky_relu = 0.1

    keys = jax.random.split(key, 9)
    x = jax.random.normal(keys[0], (N, H), dtype=jnp.float32)

    def linear_init(kw, kb):
        bound = 1.0 / jnp.sqrt(H)
        w = jax.random.uniform(kw, (H, H), minval=-bound, maxval=bound,
                               dtype=jnp.float32)
        b = jax.random.uniform(kb, (H,), minval=-bound, maxval=bound,
                               dtype=jnp.float32)
        return w, b

    w1, b1 = linear_init(keys[1], keys[2])
    w2, b2 = linear_init(keys[3], keys[4])
    # BatchNorm params perturbed deterministically so the BN fold is non-trivial.
    g1 = jnp.ones((H,), jnp.float32) + 0.1 * jax.random.normal(keys[5], (H,))
    bt1 = 0.05 * jax.random.normal(keys[6], (H,))
    m1 = 0.02 * jax.random.normal(keys[7], (H,))
    v1 = jnp.ones((H,), jnp.float32) + 0.1 * jnp.abs(
        jax.random.normal(keys[8], (H,)))
    g2 = jnp.ones((H,), jnp.float32)
    bt2 = jnp.zeros((H,), jnp.float32)
    m2 = jnp.zeros((H,), jnp.float32)
    v2 = jnp.ones((H,), jnp.float32)

    params = (w1, b1, g1, bt1, m1, v1, w2, b2, g2, bt2, m2, v2)

    # One-time parameter prep: BN fold + transpose + bf16 cast (NOT per call).
    prepared = prepare_res_dnn_params(params, compute_dtype=jnp.bfloat16)

    # Validate the kernel's y path against the pure-JAX f32 reference of the
    # original (un-folded) module math.  Tolerance accounts for bf16 matmuls.
    y = jax.block_until_ready(
        res_dnn_y(x, prepared, leaky_relu=leaky_relu, tile_m=256))
    y_ref = jax.block_until_ready(_reference_y(x, params, leaky_relu))
    max_err = float(jnp.max(jnp.abs(y - y_ref)))
    assert jnp.allclose(y, y_ref, rtol=3e-2, atol=3e-2), max_err

    # Module forward semantics: returns x unchanged (zero-cost, no copy).
    out = jax.block_until_ready(
        res_dnn_layer(x, prepared, leaky_relu=leaky_relu))
    assert jnp.array_equal(out, x)

    print("KERNEL_OK")
</pallas_src>

<mosaic_0001>
module attributes {stable_mosaic.version = 11 : i64} {
  func.func @_res_dnn_kernel(%arg0: i32, %arg1: memref<256x256xf32, #tpu.memory_space<vmem>>, %arg2: memref<256x256xbf16, #tpu.memory_space<vmem>>, %arg3: memref<1x256xf32, #tpu.memory_space<vmem>>, %arg4: memref<256x256xbf16, #tpu.memory_space<vmem>>, %arg5: memref<1x256xf32, #tpu.memory_space<vmem>>, %arg6: memref<256x256xf32, #tpu.memory_space<vmem>>) attributes {dimension_semantics = [#tpu.dimension_semantics<parallel>], iteration_bounds = array<i64: 2>, scalar_prefetch = 0 : i64, scratch_operands = 0 : i64, tpu.core_type = #tpu.core_type<tc>, window_params = [{transform_indices = @transform_0, window_bounds = array<i64: 256, 256>}, {pipeline_mode = #tpu.pipeline_mode<synchronous>, transform_indices = @transform_1, window_bounds = array<i64: 256, 256>}, {pipeline_mode = #tpu.pipeline_mode<synchronous>, transform_indices = @transform_2, window_bounds = array<i64: 1, 256>}, {pipeline_mode = #tpu.pipeline_mode<synchronous>, transform_indices = @transform_3, window_bounds = array<i64: 256, 256>}, {pipeline_mode = #tpu.pipeline_mode<synchronous>, transform_indices = @transform_4, window_bounds = array<i64: 1, 256>}, {transform_indices = @transform_5, window_bounds = array<i64: 256, 256>}]} {
    %c0 = arith.constant 0 : index
    %c0_0 = arith.constant 0 : index
    %0 = vector.load %arg1[%c0, %c0_0] : memref<256x256xf32, #tpu.memory_space<vmem>>, vector<256x256xf32>
    %1 = arith.truncf %0 : vector<256x256xf32> to vector<256x256xbf16>
    %c0_1 = arith.constant 0 : index
    %c0_2 = arith.constant 0 : index
    %2 = vector.load %arg2[%c0_1, %c0_2] : memref<256x256xbf16, #tpu.memory_space<vmem>>, vector<256x256xbf16>
    %cst = arith.constant dense<0.000000e+00> : vector<256x256xf32>
    %3 = tpu.matmul %1, %2, %cst {dimension_numbers = #tpu.dot_dimension_numbers<[1], [0], [0], [1], [0, 0, 1, 1], [], []>} : vector<256x256xbf16>, vector<256x256xbf16>, vector<256x256xf32> -> vector<256x256xf32>
    %c0_3 = arith.constant 0 : index
    %c0_4 = arith.constant 0 : index
    %4 = vector.load %arg3[%c0_3, %c0_4] : memref<1x256xf32, #tpu.memory_space<vmem>>, vector<1x256xf32>
    %5 = vector.broadcast %4 : vector<1x256xf32> to vector<256x256xf32>
    %6 = arith.addf %3, %5 : vector<256x256xf32>
    %cst_5 = arith.constant 0.000000e+00 : f32
    %7 = vector.broadcast %cst_5 : f32 to vector<256x256xf32>
    %8 = arith.cmpf oge, %6, %7 : vector<256x256xf32>
    %cst_6 = arith.constant 1.000000e-01 : f32
    %9 = vector.broadcast %cst_6 : f32 to vector<256x256xf32>
    %10 = arith.mulf %9, %6 : vector<256x256xf32>
    %11 = arith.select %8, %6, %10 : vector<256x256xi1>, vector<256x256xf32>
    %12 = arith.truncf %11 : vector<256x256xf32> to vector<256x256xbf16>
    %c0_7 = arith.constant 0 : index
    %c0_8 = arith.constant 0 : index
    %13 = vector.load %arg4[%c0_7, %c0_8] : memref<256x256xbf16, #tpu.memory_space<vmem>>, vector<256x256xbf16>
    %cst_9 = arith.constant dense<0.000000e+00> : vector<256x256xf32>
    %14 = tpu.matmul %12, %13, %cst_9 {dimension_numbers = #tpu.dot_dimension_numbers<[1], [0], [0], [1], [0, 0, 1, 1], [], []>} : vector<256x256xbf16>, vector<256x256xbf16>, vector<256x256xf32> -> vector<256x256xf32>
    %c0_10 = arith.constant 0 : index
    %c0_11 = arith.constant 0 : index
    %15 = vector.load %arg5[%c0_10, %c0_11] : memref<1x256xf32, #tpu.memory_space<vmem>>, vector<1x256xf32>
    %16 = vector.broadcast %15 : vector<1x256xf32> to vector<256x256xf32>
    %17 = arith.addf %14, %16 : vector<256x256xf32>
    %cst_12 = arith.constant 0.000000e+00 : f32
    %18 = vector.broadcast %cst_12 : f32 to vector<256x256xf32>
    %19 = arith.cmpf oge, %17, %18 : vector<256x256xf32>
    %cst_13 = arith.constant 1.000000e-01 : f32
    %20 = vector.broadcast %cst_13 : f32 to vector<256x256xf32>
    %21 = arith.mulf %20, %17 : vector<256x256xf32>
    %22 = arith.select %19, %17, %21 : vector<256x256xi1>, vector<256x256xf32>
    %23 = arith.addf %22, %0 : vector<256x256xf32>
    %c0_14 = arith.constant 0 : index
    %c0_15 = arith.constant 0 : index
    %24 = vector.load %arg6[%c0_14, %c0_15] : memref<256x256xf32, #tpu.memory_space<vmem>>, vector<256x256xf32>
    tpu.vector_store %arg6[%c0_14, %c0_15], %23 {strides = array<i32>} : memref<256x256xf32, #tpu.memory_space<vmem>>, vector<256x256xf32>,
    return
  }
  func.func @transform_0(%arg0: i32) -> (i32, i32) {
    %c0_i32 = arith.constant 0 : i32
    %c0_i32_0 = arith.constant 0 : i32
    return %arg0, %c0_i32 : i32, i32
  }
  func.func @transform_1(%arg0: i32) -> (i32, i32) {
    %c0_i32 = arith.constant 0 : i32
    %c0_i32_0 = arith.constant 0 : i32
    %c0_i32_1 = arith.constant 0 : i32
    return %c0_i32, %c0_i32_0 : i32, i32
  }
  func.func @transform_2(%arg0: i32) -> (i32, i32) {
    %c0_i32 = arith.constant 0 : i32
    %c0_i32_0 = arith.constant 0 : i32
    %c0_i32_1 = arith.constant 0 : i32
    return %c0_i32, %c0_i32_0 : i32, i32
  }
  func.func @transform_3(%arg0: i32) -> (i32, i32) {
    %c0_i32 = arith.constant 0 : i32
    %c0_i32_0 = arith.constant 0 : i32
    %c0_i32_1 = arith.constant 0 : i32
    return %c0_i32, %c0_i32_0 : i32, i32
  }
  func.func @transform_4(%arg0: i32) -> (i32, i32) {
    %c0_i32 = arith.constant 0 : i32
    %c0_i32_0 = arith.constant 0 : i32
    %c0_i32_1 = arith.constant 0 : i32
    return %c0_i32, %c0_i32_0 : i32, i32
  }
  func.func @transform_5(%arg0: i32) -> (i32, i32) {
    %c0_i32 = arith.constant 0 : i32
    %c0_i32_0 = arith.constant 0 : i32
    return %arg0, %c0_i32 : i32, i32
  }
}

</mosaic_0001>

<llo_original>
// kernel: tpu_custom_call.1
$region0: #{tpu_custom_call.1}
  #allocation0 [shape = 'u32[]', space=smem, size = 0x4, offset = 0x4, fixed_abs, tag = 'smem constant byte address 0x4 - core index']
  #allocation1 [shape = 'u32[144,128]{1,0:T(1,128)}', space=vmem, size = 0x12000, scoped, tag = 'internal scratch']
  %s0 = inlined_call_operand.hbm [shape: f32[512,256], index: 0, kind: input, shape index: {}]
  %s1 = inlined_call_operand.hbm [shape: bf16[256,256], index: 1, kind: input, shape index: {}]
  %s2 = inlined_call_operand.vmem [shape: f32[1,256], index: 2, kind: input, shape index: {}]
  %s3 = inlined_call_operand.hbm [shape: bf16[256,256], index: 3, kind: input, shape index: {}]
  %s4 = inlined_call_operand.vmem [shape: f32[1,256], index: 4, kind: input, shape index: {}]
  %s5 = inlined_call_operand.hbm [shape: f32[512,256], index: 5, kind: output, shape index: {}]
  %s6 = sld [smem:[#allocation0]]
  $region65: #{tpu_custom_call.1} parent=0
    _
  %s8 = ssub.s32 1, %s6
  %s9 = scalar_select 0, %s8, %s6
  $region1: #{tpu_custom_call.1} parent=0
    #allocation2 [shape = 'u8[524288]{0}', space=vmem, size = 0x80000, scoped, tag = 'input window, operand 0']
    #allocation3 [shape = 's32[2]{0}', space=sflag, size = 0x8, scoped, tag = 'scoped memory for tpu_custom_call.1']
    #allocation4 [shape = 's32[2]{0}', space=sflag, size = 0x8, scoped, tag = 'scoped memory for tpu_custom_call.1']
    #allocation5 [shape = 'u8[131072]{0}', space=vmem, size = 0x20000, scoped, tag = 'input window, operand 1, single buffered']
    #allocation6 [shape = 's32[1]{0}', space=sflag, size = 0x4, scoped, tag = 'scoped memory for tpu_custom_call.1']
    #allocation7 [shape = 'u8[131072]{0}', space=vmem, size = 0x20000, scoped, tag = 'input window, operand 3, single buffered']
    #allocation8 [shape = 'u8[524288]{0}', space=vmem, size = 0x80000, scoped, tag = 'output window, operand 0']
    %10 = vsyncpa [#allocation3], 0
    %s11 = scalar_lea.sflag [#allocation3], 1
    %12 = vsyncpa %s11, 0
    %13 = vsyncpa [#allocation6], 0
    %14 = vsyncpa [#allocation4], 0
    %s15 = scalar_lea.sflag [#allocation4], 1
    %16 = vsyncpa %s15, 0
    loop: start=0, step=1, limit=4
    $region2: #{tpu_custom_call.1} parent=1 // loop_pre_header
      _
    $region3: #{tpu_custom_call.1} parent=1 // loop_header
      %s18 = sphi 0, %s22
      %p19 = scmp.ge.s32.totalorder %s18, 4
      %s28 = sphi 0, %s30
      %s31 = sphi 0, %s28
      %s32 = sphi 0, %s31
      %s48 = sphi 0, %s32
      %s52 = sphi 0, %s52
      %s54 = sphi 0, %s52
      %s55 = sphi 0, %s54
      %s69 = sphi 0, %s55
      %s73 = sphi 0, %s73
      %s75 = sphi 0, %s73
      %s76 = sphi 0, %s75
      %s90 = sphi 0, %s76
      %s94 = sphi 0, %s94
      %s96 = sphi 0, %s94
      %s97 = sphi 0, %s96
      %s111 = sphi 0, %s97
      %s115 = sphi 0, %s115
      %s117 = sphi 0, %s115
      %s118 = sphi 0, %s117
      %s132 = sphi 0, %s118
      %s138 = sphi 0, %s140
      %s141 = sphi 0, %s138
      %s142 = sphi 0, %s141
      %s158 = sphi 0, %s142
    $region4: #{tpu_custom_call.1} parent=1 // loop_header_branch
      %21 = sbr.rel (%p19) target = $region8
    $region5: #{tpu_custom_call.1} parent=1 // loop_body
      %s23 = ssub.s32 %s18, 1
      %s24 = ssub.s32 %s18, 2
      %s25 = sadd.s32 %s18, 1
      %s26 = ssub.s32 %s18, %s25
      %p27 = scmp.eq.s32.totalorder %s26, 0
      %s29 = sadd.s32 %s28, 1
      %s30 = scalar_select %p27, %s28, %s29
      %p33 = pneg %p27
      %p34 = scmp.eq.s32.totalorder %s18, 1
      %p35 = por %p33, %p34
      %p36 = scmp.ne.s32.totalorder %s28, %s31
      %p37 = scmp.eq.s32.totalorder %s18, 0
      %p38 = por %p36, %p37
      %p39 = scmp.ne.s32.totalorder %s28, %s31
      %p40 = scmp.eq.s32.totalorder %s23, 1
      %p41 = por %p39, %p40
      %p42 = scmp.ne.s32.totalorder %s31, %s32
      %p43 = scmp.eq.s32.totalorder %s23, 0
      %p44 = por %p42, %p43
      %p45 = scmp.ne.s32.totalorder %s31, %s32
      %p46 = scmp.eq.s32.totalorder %s24, 1
      %p47 = por %p45, %p46
      %p49 = scmp.ne.s32.totalorder %s32, %s48
      %p50 = scmp.eq.s32.totalorder %s24, 0
      %p51 = por %p49, %p50
      %s53 = sadd.s32 %s52, 1
      %p56 = scmp.eq.s32.totalorder %s18, 1
      %p57 = scmp.ne.s32.totalorder %s52, %s54
      %p58 = scmp.eq.s32.totalorder %s18, 0
      %p59 = por %p57, %p58
      %p60 = scmp.ne.s32.totalorder %s52, %s54
      %p61 = scmp.eq.s32.totalorder %s23, 1
      %p62 = por %p60, %p61
      %p63 = scmp.ne.s32.totalorder %s54, %s55
      %p64 = scmp.eq.s32.totalorder %s23, 0
      %p65 = por %p63, %p64
      %p66 = scmp.ne.s32.totalorder %s54, %s55
      %p67 = scmp.eq.s32.totalorder %s24, 1
      %p68 = por %p66, %p67
      %p70 = scmp.ne.s32.totalorder %s55, %s69
      %p71 = scmp.eq.s32.totalorder %s24, 0
      %p72 = por %p70, %p71
      %s74 = sadd.s32 %s73, 1
      %p77 = scmp.eq.s32.totalorder %s18, 1
      %p78 = scmp.ne.s32.totalorder %s73, %s75
      %p79 = scmp.eq.s32.totalorder %s18, 0
      %p80 = por %p78, %p79
      %p81 = scmp.ne.s32.totalorder %s73, %s75
      %p82 = scmp.eq.s32.totalorder %s23, 1
      %p83 = por %p81, %p82
      %p84 = scmp.ne.s32.totalorder %s75, %s76
      %p85 = scmp.eq.s32.totalorder %s23, 0
      %p86 = por %p84, %p85
      %p87 = scmp.ne.s32.totalorder %s75, %s76
      %p88 = scmp.eq.s32.totalorder %s24, 1
      %p89 = por %p87, %p88
      %p91 = scmp.ne.s32.totalorder %s76, %s90
      %p92 = scmp.eq.s32.totalorder %s24, 0
      %p93 = por %p91, %p92
      %s95 = sadd.s32 %s94, 1
      %p98 = scmp.eq.s32.totalorder %s18, 1
      %p99 = scmp.ne.s32.totalorder %s94, %s96
      %p100 = scmp.eq.s32.totalorder %s18, 0
      %p101 = por %p99, %p100
      %p102 = scmp.ne.s32.totalorder %s94, %s96
      %p103 = scmp.eq.s32.totalorder %s23, 1
      %p104 = por %p102, %p103
      %p105 = scmp.ne.s32.totalorder %s96, %s97
      %p106 = scmp.eq.s32.totalorder %s23, 0
      %p107 = por %p105, %p106
      %p108 = scmp.ne.s32.totalorder %s96, %s97
      %p109 = scmp.eq.s32.totalorder %s24, 1
      %p110 = por %p108, %p109
      %p112 = scmp.ne.s32.totalorder %s97, %s111
      %p113 = scmp.eq.s32.totalorder %s24, 0
      %p114 = por %p112, %p113
      %s116 = sadd.s32 %s115, 1
      %p119 = scmp.eq.s32.totalorder %s18, 1
      %p120 = scmp.ne.s32.totalorder %s115, %s117
      %p121 = scmp.eq.s32.totalorder %s18, 0
      %p122 = por %p120, %p121
      %p123 = scmp.ne.s32.totalorder %s115, %s117
      %p124 = scmp.eq.s32.totalorder %s23, 1
      %p125 = por %p123, %p124
      %p126 = scmp.ne.s32.totalorder %s117, %s118
      %p127 = scmp.eq.s32.totalorder %s23, 0
      %p128 = por %p126, %p127
      %p129 = scmp.ne.s32.totalorder %s117, %s118
      %p130 = scmp.eq.s32.totalorder %s24, 1
      %p131 = por %p129, %p130
      %p133 = scmp.ne.s32.totalorder %s118, %s132
      %p134 = scmp.eq.s32.totalorder %s24, 0
      %p135 = por %p133, %p134
      %s136 = ssub.s32 %s18, %s25
      %p137 = scmp.eq.s32.totalorder %s136, 0
      %s139 = sadd.s32 %s138, 1
      %s140 = scalar_select %p137, %s138, %s139
      %p143 = pneg %p137
      %p144 = scmp.eq.s32.totalorder %s18, 1
      %p145 = por %p143, %p144
      %p146 = scmp.ne.s32.totalorder %s138, %s141
      %p147 = scmp.eq.s32.totalorder %s18, 0
      %p148 = por %p146, %p147
      %p149 = scmp.ne.s32.totalorder %s138, %s141
      %p150 = scmp.eq.s32.totalorder %s23, 1
      %p151 = por %p149, %p150
      %p152 = scmp.ne.s32.totalorder %s141, %s142
      %p153 = scmp.eq.s32.totalorder %s23, 0
      %p154 = por %p152, %p153
      %p155 = scmp.ne.s32.totalorder %s141, %s142
      %p156 = scmp.eq.s32.totalorder %s24, 1
      %p157 = por %p155, %p156
      %p159 = scmp.ne.s32.totalorder %s142, %s158
      %p160 = scmp.eq.s32.totalorder %s24, 0
      %p161 = por %p159, %p160
      %p162 = scmp.le.s32.totalorder 1, %s18
      %p163 = scmp.lt.s32.totalorder %s18, 3
      %p164 = pnand %p162, %p163
      %p165 = pneg %p164
      // Predicated region
      $region9: #{tpu_custom_call.1} parent=5 // pred_check
        _
      $region10: #{tpu_custom_call.1} parent=5 // pred_check_branch
        %167 = sbr.rel (%p164) target = $region12
      $region11: #{tpu_custom_call.1} parent=5 // pred_region
        %s168 = ssub.s32 %s18, 1
        // Predicated region
        $region13: #{tpu_custom_call.1} parent=11 // pred_check
          %p169 = pneg %p65
        $region14: #{tpu_custom_call.1} parent=11 // pred_check_branch
          %171 = sbr.rel (%p169) target = $region16
        $region15: #{tpu_custom_call.1} parent=11 // pred_region
          %s173 = ssub.s32 4096, 4096
          %174 = vsyncadd [#allocation6], %s173
          %s175 = sshll.u32 [#allocation5], 4
          %s176 = int_to_ptr.vmem [resolvable:$true] %s175
          %181 = dma.hbm_to_vmem [thread:$0]  %s1, 4096, %s176, [#allocation6], 128, 128, 8
        $region16: #{tpu_custom_call.1} parent=11 // pred_fallthru
          _
        // Predicated region
        $region17: #{tpu_custom_call.1} parent=11 // pred_check
          %p182 = pneg %p86
        $region18: #{tpu_custom_call.1} parent=11 // pred_check_branch
          %184 = sbr.rel (%p182) target = $region20
        $region19: #{tpu_custom_call.1} parent=11 // pred_region
          _
        $region20: #{tpu_custom_call.1} parent=11 // pred_fallthru
          _
        // Predicated region
        $region21: #{tpu_custom_call.1} parent=11 // pred_check
          %p185 = pneg %p107
        $region22: #{tpu_custom_call.1} parent=11 // pred_check_branch
          %187 = sbr.rel (%p185) target = $region24
        $region23: #{tpu_custom_call.1} parent=11 // pred_region
          %s189 = ssub.s32 4096, 4096
          %190 = vsyncadd [#allocation6], %s189
          %s191 = sshll.u32 [#allocation7], 4
          %s192 = int_to_ptr.vmem [resolvable:$true] %s191
          %197 = dma.hbm_to_vmem [thread:$0]  %s3, 4096, %s192, [#allocation6], 128, 128, 8
        $region24: #{tpu_custom_call.1} parent=11 // pred_fallthru
          _
        // Predicated region
        $region25: #{tpu_custom_call.1} parent=11 // pred_check
          %p198 = pneg %p128
        $region26: #{tpu_custom_call.1} parent=11 // pred_check_branch
          %200 = sbr.rel (%p198) target = $region28
        $region27: #{tpu_custom_call.1} parent=11 // pred_region
          _
        $region28: #{tpu_custom_call.1} parent=11 // pred_fallthru
          _
      $region12: #{tpu_custom_call.1} parent=5 // pred_fallthru
        _
      %p201 = scmp.lt.s32.totalorder %s18, 2
      // Predicated region
      $region29: #{tpu_custom_call.1} parent=5 // pred_check
        %p202 = pneg %p201
      $region30: #{tpu_custom_call.1} parent=5 // pred_check_branch
        %204 = sbr.rel (%p202) target = $region32
      $region31: #{tpu_custom_call.1} parent=5 // pred_region
        // Predicated region
        $region33: #{tpu_custom_call.1} parent=31 // pred_check
          %p205 = pneg %p38
        $region34: #{tpu_custom_call.1} parent=31 // pred_check_branch
          %207 = sbr.rel (%p205) target = $region36
        $region35: #{tpu_custom_call.1} parent=31 // pred_region
          %s208 = sand.u32 %s28, 1
          %s209 = scalar_lea.sflag [#allocation3], %s208
          %s210 = sand.u32 %s28, 1
          %s211 = smul.addr %s210, 512
          %s212 = scalar_lea.vmem [#allocation2], %s211
          %s213 = smul.u32 32, %s18
          %s215 = ssub.s32 8192, 8192
          %216 = vsyncadd %s209, %s215
          %s217 = smul.addr %s213, 2
          %s218 = smul.addr %s217, 128
          %s219 = scalar_lea.hbm %s0, %s218
          %s220 = sshll.u32 %s212, 4
          %s221 = int_to_ptr.vmem [resolvable:$true] %s220
          %226 = dma.hbm_to_vmem [thread:$0]  %s219, 8192, %s221, %s209, 256, 256, 16
        $region36: #{tpu_custom_call.1} parent=31 // pred_fallthru
          _
      $region32: #{tpu_custom_call.1} parent=5 // pred_fallthru
        _
      %p227 = scmp.le.s32.totalorder 1, %s18
      %p228 = scmp.lt.s32.totalorder %s18, 3
      %p229 = pnand %p227, %p228
      %p230 = pneg %p229
      // Predicated region
      $region37: #{tpu_custom_call.1} parent=5 // pred_check
        _
      $region38: #{tpu_custom_call.1} parent=5 // pred_check_branch
        %232 = sbr.rel (%p229) target = $region40
      $region39: #{tpu_custom_call.1} parent=5 // pred_region
        %s233 = ssub.s32 %s18, 1
        %s234 = sand.u32 %s31, 1
        %s235 = scalar_lea.sflag [#allocation3], %s234
        %s236 = sand.u32 %s31, 1
        %s237 = smul.addr %s236, 512
        %s238 = scalar_lea.vmem [#allocation2], %s237
        // Predicated region
        $region41: #{tpu_custom_call.1} parent=39 // pred_check
          %p239 = pneg %p44
        $region42: #{tpu_custom_call.1} parent=39 // pred_check_branch
          %241 = sbr.rel (%p239) target = $region44
        $region43: #{tpu_custom_call.1} parent=39 // pred_region
          %242 = dma.done %s235, 8192
        $region44: #{tpu_custom_call.1} parent=39 // pred_fallthru
          _
        // Predicated region
        $region45: #{tpu_custom_call.1} parent=39 // pred_check
          %p243 = pneg %p65
        $region46: #{tpu_custom_call.1} parent=39 // pred_check_branch
          %245 = sbr.rel (%p243) target = $region48
        $region47: #{tpu_custom_call.1} parent=39 // pred_region
          %246 = dma.done [#allocation6], 4096
        $region48: #{tpu_custom_call.1} parent=39 // pred_fallthru
          _
        // Predicated region
        $region49: #{tpu_custom_call.1} parent=39 // pred_check
          %p247 = pneg %p107
        $region50: #{tpu_custom_call.1} parent=39 // pred_check_branch
          %249 = sbr.rel (%p247) target = $region52
        $region51: #{tpu_custom_call.1} parent=39 // pred_region
          %250 = dma.done [#allocation6], 4096
        $region52: #{tpu_custom_call.1} parent=39 // pred_fallthru
          _
        %s251 = sand.u32 %s31, 1
        %s252 = scalar_lea.sflag [#allocation3], %s251
        %s253 = sand.u32 %s31, 1
        %s254 = smul.addr %s253, 512
        %s255 = scalar_lea.vmem [#allocation2], %s254
        %p256 = pneg %p44
        %p257 = pneg %p41
        %p258 = pneg %p65
        %p259 = pneg %p62
        %p260 = pneg %p86
        %p261 = pneg %p83
        %p262 = pneg %p107
        %p263 = pneg %p104
        %p264 = pneg %p128
        %p265 = pneg %p125
        %p266 = pneg %p154
        %p267 = pneg %p151
        %s268 = sand.u32 %s141, 1
        %s269 = scalar_lea.sflag [#allocation4], %s268
        %s270 = sand.u32 %s141, 1
        %s271 = smul.addr %s270, 512
        %s272 = scalar_lea.vmem [#allocation8], %s271
        %s273 = smul.u32 32, %s23
        %s274 = smul.u32 32, %s23
        %v275 = vld [vmem:[%s238] sm:$0xff]
        %v276 = vld [vmem:[%s238 + $0x8] sm:$0xff]
        %v277 = vld [vmem:[%s238 + $0x10] sm:$0xff]
        %v278 = vld [vmem:[%s238 + $0x18] sm:$0xff]
        %v279 = vld [vmem:[%s238 + $0x20] sm:$0xff]
        %v280 = vld [vmem:[%s238 + $0x28] sm:$0xff]
        %v281 = vld [vmem:[%s238 + $0x30] sm:$0xff]
        %v282 = vld [vmem:[%s238 + $0x38] sm:$0xff]
        %v283 = vld [vmem:[%s238 + $0x40] sm:$0xff]
        %v284 = vld [vmem:[%s238 + $0x48] sm:$0xff]
        %v285 = vld [vmem:[%s238 + $0x50] sm:$0xff]
        %v286 = vld [vmem:[%s238 + $0x58] sm:$0xff]
        %v287 = vld [vmem:[%s238 + $0x60] sm:$0xff]
        %v288 = vld [vmem:[%s238 + $0x68] sm:$0xff]
        %v289 = vld [vmem:[%s238 + $0x70] sm:$0xff]
        %v290 = vld [vmem:[%s238 + $0x78] sm:$0xff]
        %v291 = vld [vmem:[%s238 + $0x80] sm:$0xff]
        %v292 = vld [vmem:[%s238 + $0x88] sm:$0xff]
        %v293 = vld [vmem:[%s238 + $0x90] sm:$0xff]
        %v294 = vld [vmem:[%s238 + $0x98] sm:$0xff]
        %v295 = vld [vmem:[%s238 + $0xa0] sm:$0xff]
        %v296 = vld [vmem:[%s238 + $0xa8] sm:$0xff]
        %v297 = vld [vmem:[%s238 + $0xb0] sm:$0xff]
        %v298 = vld [vmem:[%s238 + $0xb8] sm:$0xff]
        %v299 = vld [vmem:[%s238 + $0xc0] sm:$0xff]
        %v300 = vld [vmem:[%s238 + $0xc8] sm:$0xff]
        %v301 = vld [vmem:[%s238 + $0xd0] sm:$0xff]
        %v302 = vld [vmem:[%s238 + $0xd8] sm:$0xff]
        %v303 = vld [vmem:[%s238 + $0xe0] sm:$0xff]
        %v304 = vld [vmem:[%s238 + $0xe8] sm:$0xff]
        %v305 = vld [vmem:[%s238 + $0xf0] sm:$0xff]
        %v306 = vld [vmem:[%s238 + $0xf8] sm:$0xff]
        %v307 = vld [vmem:[%s238 + $0x100] sm:$0xff]
        %v308 = vld [vmem:[%s238 + $0x108] sm:$0xff]
        %v309 = vld [vmem:[%s238 + $0x110] sm:$0xff]
        %v310 = vld [vmem:[%s238 + $0x118] sm:$0xff]
        %v311 = vld [vmem:[%s238 + $0x120] sm:$0xff]
        %v312 = vld [vmem:[%s238 + $0x128] sm:$0xff]
        %v313 = vld [vmem:[%s238 + $0x130] sm:$0xff]
        %v314 = vld [vmem:[%s238 + $0x138] sm:$0xff]
        %v315 = vld [vmem:[%s238 + $0x140] sm:$0xff]
        %v316 = vld [vmem:[%s238 + $0x148] sm:$0xff]
        %v317 = vld [vmem:[%s238 + $0x150] sm:$0xff]
        %v318 = vld [vmem:[%s238 + $0x158] sm:$0xff]
        %v319 = vld [vmem:[%s238 + $0x160] sm:$0xff]
        %v320 = vld [vmem:[%s238 + $0x168] sm:$0xff]
        %v321 = vld [vmem:[%s238 + $0x170] sm:$0xff]
        %v322 = vld [vmem:[%s238 + $0x178] sm:$0xff]
        %v323 = vld [vmem:[%s238 + $0x180] sm:$0xff]
        %v324 = vld [vmem:[%s238 + $0x188] sm:$0xff]
        %v325 = vld [vmem:[%s238 + $0x190] sm:$0xff]
        %v326 = vld [vmem:[%s238 + $0x198] sm:$0xff]
        %v327 = vld [vmem:[%s238 + $0x1a0] sm:$0xff]
        %v328 = vld [vmem:[%s238 + $0x1a8] sm:$0xff]
        %v329 = vld [vmem:[%s238 + $0x1b0] sm:$0xff]
        %v330 = vld [vmem:[%s238 + $0x1b8] sm:$0xff]
        %v331 = vld [vmem:[%s238 + $0x1c0] sm:$0xff]
        %v332 = vld [vmem:[%s238 + $0x1c8] sm:$0xff]
        %v333 = vld [vmem:[%s238 + $0x1d0] sm:$0xff]
        %v334 = vld [vmem:[%s238 + $0x1d8] sm:$0xff]
        %v335 = vld [vmem:[%s238 + $0x1e0] sm:$0xff]
        %v336 = vld [vmem:[%s238 + $0x1e8] sm:$0xff]
        %v337 = vld [vmem:[%s238 + $0x1f0] sm:$0xff]
        %v338 = vld [vmem:[%s238 + $0x1f8] sm:$0xff]
        %v339 = vpack.c.bf16 %v277, %v275
        %v340 = vpack.c.bf16 %v278, %v276
        %v341 = vpack.c.bf16 %v281, %v279
        %v342 = vpack.c.bf16 %v282, %v280
        %v343 = vpack.c.bf16 %v285, %v283
        %v344 = vpack.c.bf16 %v286, %v284
        %v345 = vpack.c.bf16 %v289, %v287
        %v346 = vpack.c.bf16 %v290, %v288
        %v347 = vpack.c.bf16 %v293, %v291
        %v348 = vpack.c.bf16 %v294, %v292
        %v349 = vpack.c.bf16 %v297, %v295
        %v350 = vpack.c.bf16 %v298, %v296
        %v351 = vpack.c.bf16 %v301, %v299
        %v352 = vpack.c.bf16 %v302, %v300
        %v353 = vpack.c.bf16 %v305, %v303
        %v354 = vpack.c.bf16 %v306, %v304
        %v355 = vpack.c.bf16 %v309, %v307
        %v356 = vpack.c.bf16 %v310, %v308
        %v357 = vpack.c.bf16 %v313, %v311
        %v358 = vpack.c.bf16 %v314, %v312
        %v359 = vpack.c.bf16 %v317, %v315
        %v360 = vpack.c.bf16 %v318, %v316
        %v361 = vpack.c.bf16 %v321, %v319
        %v362 = vpack.c.bf16 %v322, %v320
        %v363 = vpack.c.bf16 %v325, %v323
        %v364 = vpack.c.bf16 %v326, %v324
        %v365 = vpack.c.bf16 %v329, %v327
        %v366 = vpack.c.bf16 %v330, %v328
        %v367 = vpack.c.bf16 %v333, %v331
        %v368 = vpack.c.bf16 %v334, %v332
        %v369 = vpack.c.bf16 %v337, %v335
        %v370 = vpack.c.bf16 %v338, %v336
        %v371 = vld [vmem:[#allocation5] sm:$0xff]
        %v372 = vld [vmem:[#allocation5 + $0x8] sm:$0xff]
        %v373 = vld [vmem:[#allocation5 + $0x10] sm:$0xff]
        %v374 = vld [vmem:[#allocation5 + $0x18] sm:$0xff]
        %v375 = vld [vmem:[#allocation5 + $0x20] sm:$0xff]
        %v376 = vld [vmem:[#allocation5 + $0x28] sm:$0xff]
        %v377 = vld [vmem:[#allocation5 + $0x30] sm:$0xff]
        %v378 = vld [vmem:[#allocation5 + $0x38] sm:$0xff]
        %v379 = vld [vmem:[#allocation5 + $0x40] sm:$0xff]
        %v380 = vld [vmem:[#allocation5 + $0x48] sm:$0xff]
        %v381 = vld [vmem:[#allocation5 + $0x50] sm:$0xff]
        %v382 = vld [vmem:[#allocation5 + $0x58] sm:$0xff]
        %v383 = vld [vmem:[#allocation5 + $0x60] sm:$0xff]
        %v384 = vld [vmem:[#allocation5 + $0x68] sm:$0xff]
        %v385 = vld [vmem:[#allocation5 + $0x70] sm:$0xff]
        %v386 = vld [vmem:[#allocation5 + $0x78] sm:$0xff]
        %v387 = vld [vmem:[#allocation5 + $0x80] sm:$0xff]
        %v388 = vld [vmem:[#allocation5 + $0x88] sm:$0xff]
        %v389 = vld [vmem:[#allocation5 + $0x90] sm:$0xff]
        %v390 = vld [vmem:[#allocation5 + $0x98] sm:$0xff]
        %v391 = vld [vmem:[#allocation5 + $0xa0] sm:$0xff]
        %v392 = vld [vmem:[#allocation5 + $0xa8] sm:$0xff]
        %v393 = vld [vmem:[#allocation5 + $0xb0] sm:$0xff]
        %v394 = vld [vmem:[#allocation5 + $0xb8] sm:$0xff]
        %v395 = vld [vmem:[#allocation5 + $0xc0] sm:$0xff]
        %v396 = vld [vmem:[#allocation5 + $0xc8] sm:$0xff]
        %v397 = vld [vmem:[#allocation5 + $0xd0] sm:$0xff]
        %v398 = vld [vmem:[#allocation5 + $0xd8] sm:$0xff]
        %v399 = vld [vmem:[#allocation5 + $0xe0] sm:$0xff]
        %v400 = vld [vmem:[#allocation5 + $0xe8] sm:$0xff]
        %v401 = vld [vmem:[#allocation5 + $0xf0] sm:$0xff]
        %v402 = vld [vmem:[#allocation5 + $0xf8] sm:$0xff]
        %v403 = vld [vmem:[%s2] sm:$0x3]
        %v405 = vlaneseq
        %v406 = vshrl.u32 %v405, 7
        %v407 = vsub.s32 0, %v406
        %v408 = vrot.slane %v403, %v407
        %v409 = vlaneseq
        %v410 = vshrl.u32 %v409, 7
        %v411 = vsub.s32 1, %v410
        %v412 = vrot.slane %v403, %v411
        %v447 = vunpack.c.l.b16 %v371
        %v448 = vunpack.c.h.b16 %v371
        %v449 = vunpack.c.l.b16 %v372
        %v450 = vunpack.c.h.b16 %v372
        %v451 = vunpack.c.l.b16 %v373
        %v452 = vunpack.c.h.b16 %v373
        %v453 = vunpack.c.l.b16 %v374
        %v454 = vunpack.c.h.b16 %v374
        %v455 = vunpack.c.l.b16 %v375
        %v456 = vunpack.c.h.b16 %v375
        %v457 = vunpack.c.l.b16 %v376
        %v458 = vunpack.c.h.b16 %v376
        %v459 = vunpack.c.l.b16 %v377
        %v460 = vunpack.c.h.b16 %v377
        %v461 = vunpack.c.l.b16 %v378
        %v462 = vunpack.c.h.b16 %v378
        %v463 = vunpack.c.l.b16 %v379
        %v464 = vunpack.c.h.b16 %v379
        %v465 = vunpack.c.l.b16 %v380
        %v466 = vunpack.c.h.b16 %v380
        %v467 = vunpack.c.l.b16 %v381
        %v468 = vunpack.c.h.b16 %v381
        %v469 = vunpack.c.l.b16 %v382
        %v470 = vunpack.c.h.b16 %v382
        %v471 = vunpack.c.l.b16 %v383
        %v472 = vunpack.c.h.b16 %v383
        %v473 = vunpack.c.l.b16 %v384
        %v474 = vunpack.c.h.b16 %v384
        %v475 = vunpack.c.l.b16 %v385
        %v476 = vunpack.c.h.b16 %v385
        %v477 = vunpack.c.l.b16 %v386
        %v478 = vunpack.c.h.b16 %v386
        %v479 = vunpack.c.l.b16 %v387
        %v480 = vunpack.c.h.b16 %v387
        %v481 = vunpack.c.l.b16 %v388
        %v482 = vunpack.c.h.b16 %v388
        %v483 = vunpack.c.l.b16 %v389
        %v484 = vunpack.c.h.b16 %v389
        %v485 = vunpack.c.l.b16 %v390
        %v486 = vunpack.c.h.b16 %v390
        %v487 = vunpack.c.l.b16 %v391
        %v488 = vunpack.c.h.b16 %v391
        %v489 = vunpack.c.l.b16 %v392
        %v490 = vunpack.c.h.b16 %v392
        %v491 = vunpack.c.l.b16 %v393
        %v492 = vunpack.c.h.b16 %v393
        %v493 = vunpack.c.l.b16 %v394
        %v494 = vunpack.c.h.b16 %v394
        %v495 = vunpack.c.l.b16 %v395
        %v496 = vunpack.c.h.b16 %v395
        %v497 = vunpack.c.l.b16 %v396
        %v498 = vunpack.c.h.b16 %v396
        %v499 = vunpack.c.l.b16 %v397
        %v500 = vunpack.c.h.b16 %v397
        %v501 = vunpack.c.l.b16 %v398
        %v502 = vunpack.c.h.b16 %v398
        %v503 = vunpack.c.l.b16 %v399
        %v504 = vunpack.c.h.b16 %v399
        %v505 = vunpack.c.l.b16 %v400
        %v506 = vunpack.c.h.b16 %v400
        %v507 = vunpack.c.l.b16 %v401
        %v508 = vunpack.c.h.b16 %v401
        %v509 = vunpack.c.l.b16 %v402
        %v510 = vunpack.c.h.b16 %v402
        %v511 = vpack.c.b16 %v449, %v447
        %v512 = vpack.c.b16 %v450, %v448
        %v513 = vpack.c.b16 %v453, %v451
        %v514 = vpack.c.b16 %v454, %v452
        %v515 = vpack.c.b16 %v457, %v455
        %v516 = vpack.c.b16 %v458, %v456
        %v517 = vpack.c.b16 %v461, %v459
        %v518 = vpack.c.b16 %v462, %v460
        %v519 = vpack.c.b16 %v465, %v463
        %v520 = vpack.c.b16 %v466, %v464
        %v521 = vpack.c.b16 %v469, %v467
        %v522 = vpack.c.b16 %v470, %v468
        %v523 = vpack.c.b16 %v473, %v471
        %v524 = vpack.c.b16 %v474, %v472
        %v525 = vpack.c.b16 %v477, %v475
        %v526 = vpack.c.b16 %v478, %v476
        %v527 = vpack.c.b16 %v481, %v479
        %v528 = vpack.c.b16 %v482, %v480
        %v529 = vpack.c.b16 %v485, %v483
        %v530 = vpack.c.b16 %v486, %v484
        %v531 = vpack.c.b16 %v489, %v487
        %v532 = vpack.c.b16 %v490, %v488
        %v533 = vpack.c.b16 %v493, %v491
        %v534 = vpack.c.b16 %v494, %v492
        %v535 = vpack.c.b16 %v497, %v495
        %v536 = vpack.c.b16 %v498, %v496
        %v537 = vpack.c.b16 %v501, %v499
        %v538 = vpack.c.b16 %v502, %v500
        %v539 = vpack.c.b16 %v505, %v503
        %v540 = vpack.c.b16 %v506, %v504
        %v541 = vpack.c.b16 %v509, %v507
        %v542 = vpack.c.b16 %v510, %v508
        %575 = vmatprep.subr.bf16.mxu0 %v512
        %576 = vmatpush1.bf16.msra.mxu0 %v511
        %577 = vmatprep.subr.bf16.mxu0 %v514
        %578 = vmatpush1.bf16.msra.mxu0 %v513
        %579 = vmatprep.subr.bf16.mxu0 %v516
        %580 = vmatpush1.bf16.msra.mxu0 %v515
        %581 = vmatprep.subr.bf16.mxu0 %v518
        %582 = vmatpush1.bf16.msra.mxu0 %v517
        %583 = vmatprep.subr.bf16.mxu0 %v520
        %584 = vmatpush1.bf16.msra.mxu0 %v519
        %585 = vmatprep.subr.bf16.mxu0 %v522
        %586 = vmatpush1.bf16.msra.mxu0 %v521
        %587 = vmatprep.subr.bf16.mxu0 %v524
        %588 = vmatpush1.bf16.msra.mxu0 %v523
        %589 = vmatprep.subr.bf16.mxu0 %v526
        %590 = vmatpush1.bf16.msra.mxu0 %v525
        %591 = vmatprep.subr.bf16.mxu0 %v528
        %592 = vmatpush1.bf16.msra.mxu0 %v527
        %593 = vmatprep.subr.bf16.mxu0 %v530
        %594 = vmatpush1.bf16.msra.mxu0 %v529
        %595 = vmatprep.subr.bf16.mxu0 %v532
        %596 = vmatpush1.bf16.msra.mxu0 %v531
        %597 = vmatprep.subr.bf16.mxu0 %v534
        %598 = vmatpush1.bf16.msra.mxu0 %v533
        %599 = vmatprep.subr.bf16.mxu0 %v536
        %600 = vmatpush1.bf16.msra.mxu0 %v535
        %601 = vmatprep.subr.bf16.mxu0 %v538
        %602 = vmatpush1.bf16.msra.mxu0 %v537
        %603 = vmatprep.subr.bf16.mxu0 %v540
        %604 = vmatpush1.bf16.msra.mxu0 %v539
        %605 = vmatprep.subr.bf16.mxu0 %v542
        %606 = vmatpush1.bf16.msra.mxu0 %v541
        %607 = vmatprep.mubr.bf16.mxu0 %v340
        %608 = vmatmul.mubr.bf16.gmra.mrb[0].mxu0 %v339
        %v609 = vpop.f32.mrb[0].mxu0
        %v610 = vadd.f32 %v408, %v609
        %v611 = vpop.f32.mrb[0].mxu0
        %v612 = vadd.f32 %v412, %v611
        %v613 = vpop.f32.mrb[0].mxu0
        %v614 = vadd.f32 %v408, %v613
        %v615 = vpop.f32.mrb[0].mxu0
        %v616 = vadd.f32 %v412, %v615
        %617 = vmatprep.mubr.bf16.mxu0 %v342
        %618 = vmatmul.mubr.bf16.gmra.mrb[0].mxu0 %v341
        %v619 = vpop.f32.mrb[0].mxu0
        %v620 = vadd.f32 %v408, %v619
        %v621 = vpop.f32.mrb[0].mxu0
        %v622 = vadd.f32 %v412, %v621
        %v623 = vpop.f32.mrb[0].mxu0
        %v624 = vadd.f32 %v408, %v623
        %v625 = vpop.f32.mrb[0].mxu0
        %v626 = vadd.f32 %v412, %v625
        %627 = vmatprep.mubr.bf16.mxu0 %v344
        %628 = vmatmul.mubr.bf16.gmra.mrb[0].mxu0 %v343
        %v629 = vpop.f32.mrb[0].mxu0
        %v630 = vadd.f32 %v408, %v629
        %v631 = vpop.f32.mrb[0].mxu0
        %v632 = vadd.f32 %v412, %v631
        %v633 = vpop.f32.mrb[0].mxu0
        %v634 = vadd.f32 %v408, %v633
        %v635 = vpop.f32.mrb[0].mxu0
        %v636 = vadd.f32 %v412, %v635
        %637 = vmatprep.mubr.bf16.mxu0 %v346
        %638 = vmatmul.mubr.bf16.gmra.mrb[0].mxu0 %v345
        %v639 = vpop.f32.mrb[0].mxu0
        %v640 = vadd.f32 %v408, %v639
        %v641 = vpop.f32.mrb[0].mxu0
        %v642 = vadd.f32 %v412, %v641
        %v643 = vpop.f32.mrb[0].mxu0
        %v644 = vadd.f32 %v408, %v643
        %v645 = vpop.f32.mrb[0].mxu0
        %v646 = vadd.f32 %v412, %v645
        %647 = vmatprep.mubr.bf16.mxu0 %v348
        %648 = vmatmul.mubr.bf16.gmra.mrb[0].mxu0 %v347
        %v649 = vpop.f32.mrb[0].mxu0
        %v650 = vadd.f32 %v408, %v649
        %v651 = vpop.f32.mrb[0].mxu0
        %v652 = vadd.f32 %v412, %v651
        %v653 = vpop.f32.mrb[0].mxu0
        %v654 = vadd.f32 %v408, %v653
        %v655 = vpop.f32.mrb[0].mxu0
        %v656 = vadd.f32 %v412, %v655
        %657 = vmatprep.mubr.bf16.mxu0 %v350
        %658 = vmatmul.mubr.bf16.gmra.mrb[0].mxu0 %v349
        %v659 = vpop.f32.mrb[0].mxu0
        %v660 = vadd.f32 %v408, %v659
        %v661 = vpop.f32.mrb[0].mxu0
        %v662 = vadd.f32 %v412, %v661
        %v663 = vpop.f32.mrb[0].mxu0
        %v664 = vadd.f32 %v408, %v663
        %v665 = vpop.f32.mrb[0].mxu0
        %v666 = vadd.f32 %v412, %v665
        %667 = vmatprep.mubr.bf16.mxu0 %v352
        %668 = vmatmul.mubr.bf16.gmra.mrb[0].mxu0 %v351
        %v669 = vpop.f32.mrb[0].mxu0
        %v670 = vadd.f32 %v408, %v669
        %v671 = vpop.f32.mrb[0].mxu0
        %v672 = vadd.f32 %v412, %v671
        %v673 = vpop.f32.mrb[0].mxu0
        %v674 = vadd.f32 %v408, %v673
        %v675 = vpop.f32.mrb[0].mxu0
        %v676 = vadd.f32 %v412, %v675
        %677 = vmatprep.mubr.bf16.mxu0 %v354
        %678 = vmatmul.mubr.bf16.gmra.mrb[0].mxu0 %v353
        %v679 = vpop.f32.mrb[0].mxu0
        %v680 = vadd.f32 %v408, %v679
        %v681 = vpop.f32.mrb[0].mxu0
        %v682 = vadd.f32 %v412, %v681
        %v683 = vpop.f32.mrb[0].mxu0
        %v684 = vadd.f32 %v408, %v683
        %v685 = vpop.f32.mrb[0].mxu0
        %v686 = vadd.f32 %v412, %v685
        %687 = vmatprep.mubr.bf16.mxu0 %v356
        %688 = vmatmul.mubr.bf16.gmra.mrb[0].mxu0 %v355
        %v689 = vpop.f32.mrb[0].mxu0
        %v690 = vadd.f32 %v408, %v689
        %v691 = vpop.f32.mrb[0].mxu0
        %v692 = vadd.f32 %v412, %v691
        %v693 = vpop.f32.mrb[0].mxu0
        %v694 = vadd.f32 %v408, %v693
        %v695 = vpop.f32.mrb[0].mxu0
        %v696 = vadd.f32 %v412, %v695
        %697 = vmatprep.mubr.bf16.mxu0 %v358
        %698 = vmatmul.mubr.bf16.gmra.mrb[0].mxu0 %v357
        %v699 = vpop.f32.mrb[0].mxu0
        %v700 = vadd.f32 %v408, %v699
        %v701 = vpop.f32.mrb[0].mxu0
        %v702 = vadd.f32 %v412, %v701
        %v703 = vpop.f32.mrb[0].mxu0
        %v704 = vadd.f32 %v408, %v703
        %v705 = vpop.f32.mrb[0].mxu0
        %v706 = vadd.f32 %v412, %v705
        %707 = vmatprep.mubr.bf16.mxu0 %v360
        %708 = vmatmul.mubr.bf16.gmra.mrb[0].mxu0 %v359
        %v709 = vpop.f32.mrb[0].mxu0
        %v710 = vadd.f32 %v408, %v709
        %v711 = vpop.f32.mrb[0].mxu0
        %v712 = vadd.f32 %v412, %v711
        %v713 = vpop.f32.mrb[0].mxu0
        %v714 = vadd.f32 %v408, %v713
        %v715 = vpop.f32.mrb[0].mxu0
        %v716 = vadd.f32 %v412, %v715
        %717 = vmatprep.mubr.bf16.mxu0 %v362
        %718 = vmatmul.mubr.bf16.gmra.mrb[0].mxu0 %v361
        %v719 = vpop.f32.mrb[0].mxu0
        %v720 = vadd.f32 %v408, %v719
        %v721 = vpop.f32.mrb[0].mxu0
        %v722 = vadd.f32 %v412, %v721
        %v723 = vpop.f32.mrb[0].mxu0
        %v724 = vadd.f32 %v408, %v723
        %v725 = vpop.f32.mrb[0].mxu0
        %v726 = vadd.f32 %v412, %v725
        %727 = vmatprep.mubr.bf16.mxu0 %v364
        %728 = vmatmul.mubr.bf16.gmra.mrb[0].mxu0 %v363
        %v729 = vpop.f32.mrb[0].mxu0
        %v730 = vadd.f32 %v408, %v729
        %v731 = vpop.f32.mrb[0].mxu0
        %v732 = vadd.f32 %v412, %v731
        %v733 = vpop.f32.mrb[0].mxu0
        %v734 = vadd.f32 %v408, %v733
        %v735 = vpop.f32.mrb[0].mxu0
        %v736 = vadd.f32 %v412, %v735
        %737 = vmatprep.mubr.bf16.mxu0 %v366
        %738 = vmatmul.mubr.bf16.gmra.mrb[0].mxu0 %v365
        %v739 = vpop.f32.mrb[0].mxu0
        %v740 = vadd.f32 %v408, %v739
        %v741 = vpop.f32.mrb[0].mxu0
        %v742 = vadd.f32 %v412, %v741
        %v743 = vpop.f32.mrb[0].mxu0
        %v744 = vadd.f32 %v408, %v743
        %v745 = vpop.f32.mrb[0].mxu0
        %v746 = vadd.f32 %v412, %v745
        %747 = vmatprep.mubr.bf16.mxu0 %v368
        %748 = vmatmul.mubr.bf16.gmra.mrb[0].mxu0 %v367
        %v749 = vpop.f32.mrb[0].mxu0
        %v750 = vadd.f32 %v408, %v749
        %v751 = vpop.f32.mrb[0].mxu0
        %v752 = vadd.f32 %v412, %v751
        %v753 = vpop.f32.mrb[0].mxu0
        %v754 = vadd.f32 %v408, %v753
        %v755 = vpop.f32.mrb[0].mxu0
        %v756 = vadd.f32 %v412, %v755
        %757 = vmatprep.mubr.bf16.mxu0 %v370
        %758 = vmatmul.mubr.bf16.gmra.mrb[0].mxu0 %v369
        %v759 = vpop.f32.mrb[0].mxu0
        %v760 = vadd.f32 %v408, %v759
        %v761 = vpop.f32.mrb[0].mxu0
        %v762 = vadd.f32 %v412, %v761
        %v763 = vpop.f32.mrb[0].mxu0
        %v764 = vadd.f32 %v408, %v763
        %v765 = vpop.f32.mrb[0].mxu0
        %v766 = vadd.f32 %v412, %v765
        %767 = vdwg.mxu0
        %vm768 = vcmp.ge.f32.partialorder %v610, 0.0
        %vm769 = vcmp.ge.f32.partialorder %v612, 0.0
        %vm770 = vcmp.ge.f32.partialorder %v614, 0.0
        %vm771 = vcmp.ge.f32.partialorder %v616, 0.0
        %vm772 = vcmp.ge.f32.partialorder %v620, 0.0
        %vm773 = vcmp.ge.f32.partialorder %v622, 0.0
        %vm774 = vcmp.ge.f32.partialorder %v624, 0.0
        %vm775 = vcmp.ge.f32.partialorder %v626, 0.0
        %vm776 = vcmp.ge.f32.partialorder %v630, 0.0
        %vm777 = vcmp.ge.f32.partialorder %v632, 0.0
        %vm778 = vcmp.ge.f32.partialorder %v634, 0.0
        %vm779 = vcmp.ge.f32.partialorder %v636, 0.0
        %vm780 = vcmp.ge.f32.partialorder %v640, 0.0
        %vm781 = vcmp.ge.f32.partialorder %v642, 0.0
        %vm782 = vcmp.ge.f32.partialorder %v644, 0.0
        %vm783 = vcmp.ge.f32.partialorder %v646, 0.0
        %vm784 = vcmp.ge.f32.partialorder %v650, 0.0
        %vm785 = vcmp.ge.f32.partialorder %v652, 0.0
        %vm786 = vcmp.ge.f32.partialorder %v654, 0.0
        %vm787 = vcmp.ge.f32.partialorder %v656, 0.0
        %vm788 = vcmp.ge.f32.partialorder %v660, 0.0
        %vm789 = vcmp.ge.f32.partialorder %v662, 0.0
        %vm790 = vcmp.ge.f32.partialorder %v664, 0.0
        %vm791 = vcmp.ge.f32.partialorder %v666, 0.0
        %vm792 = vcmp.ge.f32.partialorder %v670, 0.0
        %vm793 = vcmp.ge.f32.partialorder %v672, 0.0
        %vm794 = vcmp.ge.f32.partialorder %v674, 0.0
        %vm795 = vcmp.ge.f32.partialorder %v676, 0.0
        %vm796 = vcmp.ge.f32.partialorder %v680, 0.0
        %vm797 = vcmp.ge.f32.partialorder %v682, 0.0
        %vm798 = vcmp.ge.f32.partialorder %v684, 0.0
        %vm799 = vcmp.ge.f32.partialorder %v686, 0.0
        %vm800 = vcmp.ge.f32.partialorder %v690, 0.0
        %vm801 = vcmp.ge.f32.partialorder %v692, 0.0
        %vm802 = vcmp.ge.f32.partialorder %v694, 0.0
        %vm803 = vcmp.ge.f32.partialorder %v696, 0.0
        %vm804 = vcmp.ge.f32.partialorder %v700, 0.0
        %vm805 = vcmp.ge.f32.partialorder %v702, 0.0
        %vm806 = vcmp.ge.f32.partialorder %v704, 0.0
        %vm807 = vcmp.ge.f32.partialorder %v706, 0.0
        %vm808 = vcmp.ge.f32.partialorder %v710, 0.0
        %vm809 = vcmp.ge.f32.partialorder %v712, 0.0
        %vm810 = vcmp.ge.f32.partialorder %v714, 0.0
        %vm811 = vcmp.ge.f32.partialorder %v716, 0.0
        %vm812 = vcmp.ge.f32.partialorder %v720, 0.0
        %vm813 = vcmp.ge.f32.partialorder %v722, 0.0
        %vm814 = vcmp.ge.f32.partialorder %v724, 0.0
        %vm815 = vcmp.ge.f32.partialorder %v726, 0.0
        %vm816 = vcmp.ge.f32.partialorder %v730, 0.0
        %vm817 = vcmp.ge.f32.partialorder %v732, 0.0
        %vm818 = vcmp.ge.f32.partialorder %v734, 0.0
        %vm819 = vcmp.ge.f32.partialorder %v736, 0.0
        %vm820 = vcmp.ge.f32.partialorder %v740, 0.0
        %vm821 = vcmp.ge.f32.partialorder %v742, 0.0
        %vm822 = vcmp.ge.f32.partialorder %v744, 0.0
        %vm823 = vcmp.ge.f32.partialorder %v746, 0.0
        %vm824 = vcmp.ge.f32.partialorder %v750, 0.0
        %vm825 = vcmp.ge.f32.partialorder %v752, 0.0
        %vm826 = vcmp.ge.f32.partialorder %v754, 0.0
        %vm827 = vcmp.ge.f32.partialorder %v756, 0.0
        %vm828 = vcmp.ge.f32.partialorder %v760, 0.0
        %vm829 = vcmp.ge.f32.partialorder %v762, 0.0
        %vm830 = vcmp.ge.f32.partialorder %v764, 0.0
        %vm831 = vcmp.ge.f32.partialorder %v766, 0.0
        %v832 = vmul.f32 %v610, 0.1
        %v833 = vmul.f32 %v612, 0.1
        %v834 = vmul.f32 %v614, 0.1
        %v835 = vmul.f32 %v616, 0.1
        %v836 = vmul.f32 %v620, 0.1
        %v837 = vmul.f32 %v622, 0.1
        %v838 = vmul.f32 %v624, 0.1
        %v839 = vmul.f32 %v626, 0.1
        %v840 = vmul.f32 %v630, 0.1
        %v841 = vmul.f32 %v632, 0.1
        %v842 = vmul.f32 %v634, 0.1
        %v843 = vmul.f32 %v636, 0.1
        %v844 = vmul.f32 %v640, 0.1
        %v845 = vmul.f32 %v642, 0.1
        %v846 = vmul.f32 %v644, 0.1
        %v847 = vmul.f32 %v646, 0.1
        %v848 = vmul.f32 %v650, 0.1
        %v849 = vmul.f32 %v652, 0.1
        %v850 = vmul.f32 %v654, 0.1
        %v851 = vmul.f32 %v656, 0.1
        %v852 = vmul.f32 %v660, 0.1
        %v853 = vmul.f32 %v662, 0.1
        %v854 = vmul.f32 %v664, 0.1
        %v855 = vmul.f32 %v666, 0.1
        %v856 = vmul.f32 %v670, 0.1
        %v857 = vmul.f32 %v672, 0.1
        %v858 = vmul.f32 %v674, 0.1
        %v859 = vmul.f32 %v676, 0.1
        %v860 = vmul.f32 %v680, 0.1
        %v861 = vmul.f32 %v682, 0.1
        %v862 = vmul.f32 %v684, 0.1
        %v863 = vmul.f32 %v686, 0.1
        %v864 = vmul.f32 %v690, 0.1
        %v865 = vmul.f32 %v692, 0.1
        %v866 = vmul.f32 %v694, 0.1
        %v867 = vmul.f32 %v696, 0.1
        %v868 = vmul.f32 %v700, 0.1
        %v869 = vmul.f32 %v702, 0.1
        %v870 = vmul.f32 %v704, 0.1
        %v871 = vmul.f32 %v706, 0.1
        %v872 = vmul.f32 %v710, 0.1
        %v873 = vmul.f32 %v712, 0.1
        %v874 = vmul.f32 %v714, 0.1
        %v875 = vmul.f32 %v716, 0.1
        %v876 = vmul.f32 %v720, 0.1
        %v877 = vmul.f32 %v722, 0.1
        %v878 = vmul.f32 %v724, 0.1
        %v879 = vmul.f32 %v726, 0.1
        %v880 = vmul.f32 %v730, 0.1
        %v881 = vmul.f32 %v732, 0.1
        %v882 = vmul.f32 %v734, 0.1
        %v883 = vmul.f32 %v736, 0.1
        %v884 = vmul.f32 %v740, 0.1
        %v885 = vmul.f32 %v742, 0.1
        %v886 = vmul.f32 %v744, 0.1
        %v887 = vmul.f32 %v746, 0.1
        %v888 = vmul.f32 %v750, 0.1
        %v889 = vmul.f32 %v752, 0.1
        %v890 = vmul.f32 %v754, 0.1
        %v891 = vmul.f32 %v756, 0.1
        %v892 = vmul.f32 %v760, 0.1
        %v893 = vmul.f32 %v762, 0.1
        %v894 = vmul.f32 %v764, 0.1
        %v895 = vmul.f32 %v766, 0.1
        %v896 = vsel %vm768, %v610, %v832
        %v897 = vsel %vm769, %v612, %v833
        %v898 = vsel %vm770, %v614, %v834
        %v899 = vsel %vm771, %v616, %v835
        %v900 = vsel %vm772, %v620, %v836
        %v901 = vsel %vm773, %v622, %v837
        %v902 = vsel %vm774, %v624, %v838
        %v903 = vsel %vm775, %v626, %v839
        %v904 = vsel %vm776, %v630, %v840
        %v905 = vsel %vm777, %v632, %v841
        %v906 = vsel %vm778, %v634, %v842
        %v907 = vsel %vm779, %v636, %v843
        %v908 = vsel %vm780, %v640, %v844
        %v909 = vsel %vm781, %v642, %v845
        %v910 = vsel %vm782, %v644, %v846
        %v911 = vsel %vm783, %v646, %v847
        %v912 = vsel %vm784, %v650, %v848
        %v913 = vsel %vm785, %v652, %v849
        %v914 = vsel %vm786, %v654, %v850
        %v915 = vsel %vm787, %v656, %v851
        %v916 = vsel %vm788, %v660, %v852
        %v917 = vsel %vm789, %v662, %v853
        %v918 = vsel %vm790, %v664, %v854
        %v919 = vsel %vm791, %v666, %v855
        %v920 = vsel %vm792, %v670, %v856
        %v921 = vsel %vm793, %v672, %v857
        %v922 = vsel %vm794, %v674, %v858
        %v923 = vsel %vm795, %v676, %v859
        %v924 = vsel %vm796, %v680, %v860
        %v925 = vsel %vm797, %v682, %v861
        %v926 = vsel %vm798, %v684, %v862
        %v927 = vsel %vm799, %v686, %v863
        %v928 = vsel %vm800, %v690, %v864
        %v929 = vsel %vm801, %v692, %v865
        %v930 = vsel %vm802, %v694, %v866
        %v931 = vsel %vm803, %v696, %v867
        %v932 = vsel %vm804, %v700, %v868
        %v933 = vsel %vm805, %v702, %v869
        %v934 = vsel %vm806, %v704, %v870
        %v935 = vsel %vm807, %v706, %v871
        %v936 = vsel %vm808, %v710, %v872
        %v937 = vsel %vm809, %v712, %v873
        %v938 = vsel %vm810, %v714, %v874
        %v939 = vsel %vm811, %v716, %v875
        %v940 = vsel %vm812, %v720, %v876
        %v941 = vsel %vm813, %v722, %v877
        %v942 = vsel %vm814, %v724, %v878
        %v943 = vsel %vm815, %v726, %v879
        %v944 = vsel %vm816, %v730, %v880
        %v945 = vsel %vm817, %v732, %v881
        %v946 = vsel %vm818, %v734, %v882
        %v947 = vsel %vm819, %v736, %v883
        %v948 = vsel %vm820, %v740, %v884
        %v949 = vsel %vm821, %v742, %v885
        %v950 = vsel %vm822, %v744, %v886
        %v951 = vsel %vm823, %v746, %v887
        %v952 = vsel %vm824, %v750, %v888
        %v953 = vsel %vm825, %v752, %v889
        %v954 = vsel %vm826, %v754, %v890
        %v955 = vsel %vm827, %v756, %v891
        %v956 = vsel %vm828, %v760, %v892
        %v957 = vsel %vm829, %v762, %v893
        %v958 = vsel %vm830, %v764, %v894
        %v959 = vsel %vm831, %v766, %v895
        %v960 = vpack.c.bf16 %v898, %v896
        %v961 = vpack.c.bf16 %v899, %v897
        %v962 = vpack.c.bf16 %v902, %v900
        %v963 = vpack.c.bf16 %v903, %v901
        %v964 = vpack.c.bf16 %v906, %v904
        %v965 = vpack.c.bf16 %v907, %v905
        %v966 = vpack.c.bf16 %v910, %v908
        %v967 = vpack.c.bf16 %v911, %v909
        %v968 = vpack.c.bf16 %v914, %v912
        %v969 = vpack.c.bf16 %v915, %v913
        %v970 = vpack.c.bf16 %v918, %v916
        %v971 = vpack.c.bf16 %v919, %v917
        %v972 = vpack.c.bf16 %v922, %v920
        %v973 = vpack.c.bf16 %v923, %v921
        %v974 = vpack.c.bf16 %v926, %v924
        %v975 = vpack.c.bf16 %v927, %v925
        %v976 = vpack.c.bf16 %v930, %v928
        %v977 = vpack.c.bf16 %v931, %v929
        %v978 = vpack.c.bf16 %v934, %v932
        %v979 = vpack.c.bf16 %v935, %v933
        %v980 = vpack.c.bf16 %v938, %v936
        %v981 = vpack.c.bf16 %v939, %v937
        %v982 = vpack.c.bf16 %v942, %v940
        %v983 = vpack.c.bf16 %v943, %v941
        %v984 = vpack.c.bf16 %v946, %v944
        %v985 = vpack.c.bf16 %v947, %v945
        %v986 = vpack.c.bf16 %v950, %v948
        %v987 = vpack.c.bf16 %v951, %v949
        %v988 = vpack.c.bf16 %v954, %v952
        %v989 = vpack.c.bf16 %v955, %v953
        %v990 = vpack.c.bf16 %v958, %v956
        %v991 = vpack.c.bf16 %v959, %v957
        %v992 = vld [vmem:[#allocation7] sm:$0xff]
        %v993 = vld [vmem:[#allocation7 + $0x8] sm:$0xff]
        %v994 = vld [vmem:[#allocation7 + $0x10] sm:$0xff]
        %v995 = vld [vmem:[#allocation7 + $0x18] sm:$0xff]
        %v996 = vld [vmem:[#allocation7 + $0x20] sm:$0xff]
        %v997 = vld [vmem:[#allocation7 + $0x28] sm:$0xff]
        %v998 = vld [vmem:[#allocation7 + $0x30] sm:$0xff]
        %v999 = vld [vmem:[#allocation7 + $0x38] sm:$0xff]
        %v1000 = vld [vmem:[#allocation7 + $0x40] sm:$0xff]
        %v1001 = vld [vmem:[#allocation7 + $0x48] sm:$0xff]
        %v1002 = vld [vmem:[#allocation7 + $0x50] sm:$0xff]
        %v1003 = vld [vmem:[#allocation7 + $0x58] sm:$0xff]
        %v1004 = vld [vmem:[#allocation7 + $0x60] sm:$0xff]
        %v1005 = vld [vmem:[#allocation7 + $0x68] sm:$0xff]
        %v1006 = vld [vmem:[#allocation7 + $0x70] sm:$0xff]
        %v1007 = vld [vmem:[#allocation7 + $0x78] sm:$0xff]
        %v1008 = vld [vmem:[#allocation7 + $0x80] sm:$0xff]
        %v1009 = vld [vmem:[#allocation7 + $0x88] sm:$0xff]
        %v1010 = vld [vmem:[#allocation7 + $0x90] sm:$0xff]
        %v1011 = vld [vmem:[#allocation7 + $0x98] sm:$0xff]
        %v1012 = vld [vmem:[#allocation7 + $0xa0] sm:$0xff]
        %v1013 = vld [vmem:[#allocation7 + $0xa8] sm:$0xff]
        %v1014 = vld [vmem:[#allocation7 + $0xb0] sm:$0xff]
        %v1015 = vld [vmem:[#allocation7 + $0xb8] sm:$0xff]
        %v1016 = vld [vmem:[#allocation7 + $0xc0] sm:$0xff]
        %v1017 = vld [vmem:[#allocation7 + $0xc8] sm:$0xff]
        %v1018 = vld [vmem:[#allocation7 + $0xd0] sm:$0xff]
        %v1019 = vld [vmem:[#allocation7 + $0xd8] sm:$0xff]
        %v1020 = vld [vmem:[#allocation7 + $0xe0] sm:$0xff]
        %v1021 = vld [vmem:[#allocation7 + $0xe8] sm:$0xff]
        %v1022 = vld [vmem:[#allocation7 + $0xf0] sm:$0xff]
        %v1023 = vld [vmem:[#allocation7 + $0xf8] sm:$0xff]
        %v1024 = vld [vmem:[%s4] sm:$0x3]
        %v1026 = vlaneseq
        %v1027 = vshrl.u32 %v1026, 7
        %v1028 = vsub.s32 0, %v1027
        %v1029 = vrot.slane %v1024, %v1028
        %v1030 = vlaneseq
        %v1031 = vshrl.u32 %v1030, 7
        %v1032 = vsub.s32 1, %v1031
        %v1033 = vrot.slane %v1024, %v1032
        %v1068 = vunpack.c.l.b16 %v992
        %v1069 = vunpack.c.h.b16 %v992
        %v1070 = vunpack.c.l.b16 %v993
        %v1071 = vunpack.c.h.b16 %v993
        %v1072 = vunpack.c.l.b16 %v994
        %v1073 = vunpack.c.h.b16 %v994
        %v1074 = vunpack.c.l.b16 %v995
        %v1075 = vunpack.c.h.b16 %v995
        %v1076 = vunpack.c.l.b16 %v996
        %v1077 = vunpack.c.h.b16 %v996
        %v1078 = vunpack.c.l.b16 %v997
        %v1079 = vunpack.c.h.b16 %v997
        %v1080 = vunpack.c.l.b16 %v998
        %v1081 = vunpack.c.h.b16 %v998
        %v1082 = vunpack.c.l.b16 %v999
        %v1083 = vunpack.c.h.b16 %v999
        %v1084 = vunpack.c.l.b16 %v1000
        %v1085 = vunpack.c.h.b16 %v1000
        %v1086 = vunpack.c.l.b16 %v1001
        %v1087 = vunpack.c.h.b16 %v1001
        %v1088 = vunpack.c.l.b16 %v1002
        %v1089 = vunpack.c.h.b16 %v1002
        %v1090 = vunpack.c.l.b16 %v1003
        %v1091 = vunpack.c.h.b16 %v1003
        %v1092 = vunpack.c.l.b16 %v1004
        %v1093 = vunpack.c.h.b16 %v1004
        %v1094 = vunpack.c.l.b16 %v1005
        %v1095 = vunpack.c.h.b16 %v1005
        %v1096 = vunpack.c.l.b16 %v1006
        %v1097 = vunpack.c.h.b16 %v1006
        %v1098 = vunpack.c.l.b16 %v1007
        %v1099 = vunpack.c.h.b16 %v1007
        %v1100 = vunpack.c.l.b16 %v1008
        %v1101 = vunpack.c.h.b16 %v1008
        %v1102 = vunpack.c.l.b16 %v1009
        %v1103 = vunpack.c.h.b16 %v1009
        %v1104 = vunpack.c.l.b16 %v1010
        %v1105 = vunpack.c.h.b16 %v1010
        %v1106 = vunpack.c.l.b16 %v1011
        %v1107 = vunpack.c.h.b16 %v1011
        %v1108 = vunpack.c.l.b16 %v1012
        %v1109 = vunpack.c.h.b16 %v1012
        %v1110 = vunpack.c.l.b16 %v1013
        %v1111 = vunpack.c.h.b16 %v1013
        %v1112 = vunpack.c.l.b16 %v1014
        %v1113 = vunpack.c.h.b16 %v1014
        %v1114 = vunpack.c.l.b16 %v1015
        %v1115 = vunpack.c.h.b16 %v1015
        %v1116 = vunpack.c.l.b16 %v1016
        %v1117 = vunpack.c.h.b16 %v1016
        %v1118 = vunpack.c.l.b16 %v1017
        %v1119 = vunpack.c.h.b16 %v1017
        %v1120 = vunpack.c.l.b16 %v1018
        %v1121 = vunpack.c.h.b16 %v1018
        %v1122 = vunpack.c.l.b16 %v1019
        %v1123 = vunpack.c.h.b16 %v1019
        %v1124 = vunpack.c.l.b16 %v1020
        %v1125 = vunpack.c.h.b16 %v1020
        %v1126 = vunpack.c.l.b16 %v1021
        %v1127 = vunpack.c.h.b16 %v1021
        %v1128 = vunpack.c.l.b16 %v1022
        %v1129 = vunpack.c.h.b16 %v1022
        %v1130 = vunpack.c.l.b16 %v1023
        %v1131 = vunpack.c.h.b16 %v1023
        %v1132 = vpack.c.b16 %v1070, %v1068
        %v1133 = vpack.c.b16 %v1071, %v1069
        %v1134 = vpack.c.b16 %v1074, %v1072
        %v1135 = vpack.c.b16 %v1075, %v1073
        %v1136 = vpack.c.b16 %v1078, %v1076
        %v1137 = vpack.c.b16 %v1079, %v1077
        %v1138 = vpack.c.b16 %v1082, %v1080
        %v1139 = vpack.c.b16 %v1083, %v1081
        %v1140 = vpack.c.b16 %v1086, %v1084
        %v1141 = vpack.c.b16 %v1087, %v1085
        %v1142 = vpack.c.b16 %v1090, %v1088
        %v1143 = vpack.c.b16 %v1091, %v1089
        %v1144 = vpack.c.b16 %v1094, %v1092
        %v1145 = vpack.c.b16 %v1095, %v1093
        %v1146 = vpack.c.b16 %v1098, %v1096
        %v1147 = vpack.c.b16 %v1099, %v1097
        %v1148 = vpack.c.b16 %v1102, %v1100
        %v1149 = vpack.c.b16 %v1103, %v1101
        %v1150 = vpack.c.b16 %v1106, %v1104
        %v1151 = vpack.c.b16 %v1107, %v1105
        %v1152 = vpack.c.b16 %v1110, %v1108
        %v1153 = vpack.c.b16 %v1111, %v1109
        %v1154 = vpack.c.b16 %v1114, %v1112
        %v1155 = vpack.c.b16 %v1115, %v1113
        %v1156 = vpack.c.b16 %v1118, %v1116
        %v1157 = vpack.c.b16 %v1119, %v1117
        %v1158 = vpack.c.b16 %v1122, %v1120
        %v1159 = vpack.c.b16 %v1123, %v1121
        %v1160 = vpack.c.b16 %v1126, %v1124
        %v1161 = vpack.c.b16 %v1127, %v1125
        %v1162 = vpack.c.b16 %v1130, %v1128
        %v1163 = vpack.c.b16 %v1131, %v1129
        %1196 = vmatprep.subr.bf16.mxu0 %v1133
        %1197 = vmatpush1.bf16.msra.mxu0 %v1132
        %1198 = vmatprep.subr.bf16.mxu0 %v1135
        %1199 = vmatpush1.bf16.msra.mxu0 %v1134
        %1200 = vmatprep.subr.bf16.mxu0 %v1137
        %1201 = vmatpush1.bf16.msra.mxu0 %v1136
        %1202 = vmatprep.subr.bf16.mxu0 %v1139
        %1203 = vmatpush1.bf16.msra.mxu0 %v1138
        %1204 = vmatprep.subr.bf16.mxu0 %v1141
        %1205 = vmatpush1.bf16.msra.mxu0 %v1140
        %1206 = vmatprep.subr.bf16.mxu0 %v1143
        %1207 = vmatpush1.bf16.msra.mxu0 %v1142
        %1208 = vmatprep.subr.bf16.mxu0 %v1145
        %1209 = vmatpush1.bf16.msra.mxu0 %v1144
        %1210 = vmatprep.subr.bf16.mxu0 %v1147
        %1211 = vmatpush1.bf16.msra.mxu0 %v1146
        %1212 = vmatprep.subr.bf16.mxu0 %v1149
        %1213 = vmatpush1.bf16.msra.mxu0 %v1148
        %1214 = vmatprep.subr.bf16.mxu0 %v1151
        %1215 = vmatpush1.bf16.msra.mxu0 %v1150
        %1216 = vmatprep.subr.bf16.mxu0 %v1153
        %1217 = vmatpush1.bf16.msra.mxu0 %v1152
        %1218 = vmatprep.subr.bf16.mxu0 %v1155
        %1219 = vmatpush1.bf16.msra.mxu0 %v1154
        %1220 = vmatprep.subr.bf16.mxu0 %v1157
        %1221 = vmatpush1.bf16.msra.mxu0 %v1156
        %1222 = vmatprep.subr.bf16.mxu0 %v1159
        %1223 = vmatpush1.bf16.msra.mxu0 %v1158
        %1224 = vmatprep.subr.bf16.mxu0 %v1161
        %1225 = vmatpush1.bf16.msra.mxu0 %v1160
        %1226 = vmatprep.subr.bf16.mxu0 %v1163
        %1227 = vmatpush1.bf16.msra.mxu0 %v1162
        %1228 = vmatprep.mubr.bf16.mxu0 %v961
        %1229 = vmatmul.mubr.bf16.gmra.mrb[0].mxu0 %v960
        %v1230 = vpop.f32.mrb[0].mxu0
        %v1231 = vadd.f32 %v1029, %v1230
        %v1232 = vpop.f32.mrb[0].mxu0
        %v1233 = vadd.f32 %v1033, %v1232
        %v1234 = vpop.f32.mrb[0].mxu0
        %v1235 = vadd.f32 %v1029, %v1234
        %v1236 = vpop.f32.mrb[0].mxu0
        %v1237 = vadd.f32 %v1033, %v1236
        %1238 = vmatprep.mubr.bf16.mxu0 %v963
        %1239 = vmatmul.mubr.bf16.gmra.mrb[0].mxu0 %v962
        %v1240 = vpop.f32.mrb[0].mxu0
        %v1241 = vadd.f32 %v1029, %v1240
        %v1242 = vpop.f32.mrb[0].mxu0
        %v1243 = vadd.f32 %v1033, %v1242
        %v1244 = vpop.f32.mrb[0].mxu0
        %v1245 = vadd.f32 %v1029, %v1244
        %v1246 = vpop.f32.mrb[0].mxu0
        %v1247 = vadd.f32 %v1033, %v1246
        %1248 = vmatprep.mubr.bf16.mxu0 %v965
        %1249 = vmatmul.mubr.bf16.gmra.mrb[0].mxu0 %v964
        %v1250 = vpop.f32.mrb[0].mxu0
        %v1251 = vadd.f32 %v1029, %v1250
        %v1252 = vpop.f32.mrb[0].mxu0
        %v1253 = vadd.f32 %v1033, %v1252
        %v1254 = vpop.f32.mrb[0].mxu0
        %v1255 = vadd.f32 %v1029, %v1254
        %v1256 = vpop.f32.mrb[0].mxu0
        %v1257 = vadd.f32 %v1033, %v1256
        %1258 = vmatprep.mubr.bf16.mxu0 %v967
        %1259 = vmatmul.mubr.bf16.gmra.mrb[0].mxu0 %v966
        %v1260 = vpop.f32.mrb[0].mxu0
        %v1261 = vadd.f32 %v1029, %v1260
        %v1262 = vpop.f32.mrb[0].mxu0
        %v1263 = vadd.f32 %v1033, %v1262
        %v1264 = vpop.f32.mrb[0].mxu0
        %v1265 = vadd.f32 %v1029, %v1264
        %v1266 = vpop.f32.mrb[0].mxu0
        %v1267 = vadd.f32 %v1033, %v1266
        %1268 = vmatprep.mubr.bf16.mxu0 %v969
        %1269 = vmatmul.mubr.bf16.gmra.mrb[0].mxu0 %v968
        %v1270 = vpop.f32.mrb[0].mxu0
        %v1271 = vadd.f32 %v1029, %v1270
        %v1272 = vpop.f32.mrb[0].mxu0
        %v1273 = vadd.f32 %v1033, %v1272
        %v1274 = vpop.f32.mrb[0].mxu0
        %v1275 = vadd.f32 %v1029, %v1274
        %v1276 = vpop.f32.mrb[0].mxu0
        %v1277 = vadd.f32 %v1033, %v1276
        %1278 = vmatprep.mubr.bf16.mxu0 %v971
        %1279 = vmatmul.mubr.bf16.gmra.mrb[0].mxu0 %v970
        %v1280 = vpop.f32.mrb[0].mxu0
        %v1281 = vadd.f32 %v1029, %v1280
        %v1282 = vpop.f32.mrb[0].mxu0
        %v1283 = vadd.f32 %v1033, %v1282
        %v1284 = vpop.f32.mrb[0].mxu0
        %v1285 = vadd.f32 %v1029, %v1284
        %v1286 = vpop.f32.mrb[0].mxu0
        %v1287 = vadd.f32 %v1033, %v1286
        %1288 = vmatprep.mubr.bf16.mxu0 %v973
        %1289 = vmatmul.mubr.bf16.gmra.mrb[0].mxu0 %v972
        %v1290 = vpop.f32.mrb[0].mxu0
        %v1291 = vadd.f32 %v1029, %v1290
        %v1292 = vpop.f32.mrb[0].mxu0
        %v1293 = vadd.f32 %v1033, %v1292
        %v1294 = vpop.f32.mrb[0].mxu0
        %v1295 = vadd.f32 %v1029, %v1294
        %v1296 = vpop.f32.mrb[0].mxu0
        %v1297 = vadd.f32 %v1033, %v1296
        %1298 = vmatprep.mubr.bf16.mxu0 %v975
        %1299 = vmatmul.mubr.bf16.gmra.mrb[0].mxu0 %v974
        %v1300 = vpop.f32.mrb[0].mxu0
        %v1301 = vadd.f32 %v1029, %v1300
        %v1302 = vpop.f32.mrb[0].mxu0
        %v1303 = vadd.f32 %v1033, %v1302
        %v1304 = vpop.f32.mrb[0].mxu0
        %v1305 = vadd.f32 %v1029, %v1304
        %v1306 = vpop.f32.mrb[0].mxu0
        %v1307 = vadd.f32 %v1033, %v1306
        %1308 = vmatprep.mubr.bf16.mxu0 %v977
        %1309 = vmatmul.mubr.bf16.gmra.mrb[0].mxu0 %v976
        %v1310 = vpop.f32.mrb[0].mxu0
        %v1311 = vadd.f32 %v1029, %v1310
        %v1312 = vpop.f32.mrb[0].mxu0
        %v1313 = vadd.f32 %v1033, %v1312
        %v1314 = vpop.f32.mrb[0].mxu0
        %v1315 = vadd.f32 %v1029, %v1314
        %v1316 = vpop.f32.mrb[0].mxu0
        %v1317 = vadd.f32 %v1033, %v1316
        %1318 = vmatprep.mubr.bf16.mxu0 %v979
        %1319 = vmatmul.mubr.bf16.gmra.mrb[0].mxu0 %v978
        %v1320 = vpop.f32.mrb[0].mxu0
        %v1321 = vadd.f32 %v1029, %v1320
        %v1322 = vpop.f32.mrb[0].mxu0
        %v1323 = vadd.f32 %v1033, %v1322
        %v1324 = vpop.f32.mrb[0].mxu0
        %v1325 = vadd.f32 %v1029, %v1324
        %v1326 = vpop.f32.mrb[0].mxu0
        %v1327 = vadd.f32 %v1033, %v1326
        %1328 = vmatprep.mubr.bf16.mxu0 %v981
        %1329 = vmatmul.mubr.bf16.gmra.mrb[0].mxu0 %v980
        %v1330 = vpop.f32.mrb[0].mxu0
        %v1331 = vadd.f32 %v1029, %v1330
        %v1332 = vpop.f32.mrb[0].mxu0
        %v1333 = vadd.f32 %v1033, %v1332
        %v1334 = vpop.f32.mrb[0].mxu0
        %v1335 = vadd.f32 %v1029, %v1334
        %v1336 = vpop.f32.mrb[0].mxu0
        %v1337 = vadd.f32 %v1033, %v1336
        %1338 = vmatprep.mubr.bf16.mxu0 %v983
        %1339 = vmatmul.mubr.bf16.gmra.mrb[0].mxu0 %v982
        %v1340 = vpop.f32.mrb[0].mxu0
        %v1341 = vadd.f32 %v1029, %v1340
        %v1342 = vpop.f32.mrb[0].mxu0
        %v1343 = vadd.f32 %v1033, %v1342
        %v1344 = vpop.f32.mrb[0].mxu0
        %v1345 = vadd.f32 %v1029, %v1344
        %v1346 = vpop.f32.mrb[0].mxu0
        %v1347 = vadd.f32 %v1033, %v1346
        %1348 = vmatprep.mubr.bf16.mxu0 %v985
        %1349 = vmatmul.mubr.bf16.gmra.mrb[0].mxu0 %v984
        %v1350 = vpop.f32.mrb[0].mxu0
        %v1351 = vadd.f32 %v1029, %v1350
        %v1352 = vpop.f32.mrb[0].mxu0
        %v1353 = vadd.f32 %v1033, %v1352
        %v1354 = vpop.f32.mrb[0].mxu0
        %v1355 = vadd.f32 %v1029, %v1354
        %v1356 = vpop.f32.mrb[0].mxu0
        %v1357 = vadd.f32 %v1033, %v1356
        %1358 = vmatprep.mubr.bf16.mxu0 %v987
        %1359 = vmatmul.mubr.bf16.gmra.mrb[0].mxu0 %v986
        %v1360 = vpop.f32.mrb[0].mxu0
        %v1361 = vadd.f32 %v1029, %v1360
        %v1362 = vpop.f32.mrb[0].mxu0
        %v1363 = vadd.f32 %v1033, %v1362
        %v1364 = vpop.f32.mrb[0].mxu0
        %v1365 = vadd.f32 %v1029, %v1364
        %v1366 = vpop.f32.mrb[0].mxu0
        %v1367 = vadd.f32 %v1033, %v1366
        %1368 = vmatprep.mubr.bf16.mxu0 %v989
        %1369 = vmatmul.mubr.bf16.gmra.mrb[0].mxu0 %v988
        %v1370 = vpop.f32.mrb[0].mxu0
        %v1371 = vadd.f32 %v1029, %v1370
        %v1372 = vpop.f32.mrb[0].mxu0
        %v1373 = vadd.f32 %v1033, %v1372
        %v1374 = vpop.f32.mrb[0].mxu0
        %v1375 = vadd.f32 %v1029, %v1374
        %v1376 = vpop.f32.mrb[0].mxu0
        %v1377 = vadd.f32 %v1033, %v1376
        %1378 = vmatprep.mubr.bf16.mxu0 %v991
        %1379 = vmatmul.mubr.bf16.gmra.mrb[0].mxu0 %v990
        %v1380 = vpop.f32.mrb[0].mxu0
        %v1381 = vadd.f32 %v1029, %v1380
        %v1382 = vpop.f32.mrb[0].mxu0
        %v1383 = vadd.f32 %v1033, %v1382
        %v1384 = vpop.f32.mrb[0].mxu0
        %v1385 = vadd.f32 %v1029, %v1384
        %v1386 = vpop.f32.mrb[0].mxu0
        %v1387 = vadd.f32 %v1033, %v1386
        %1388 = vdwg.mxu0
        %vm1389 = vcmp.ge.f32.partialorder %v1231, 0.0
        %vm1390 = vcmp.ge.f32.partialorder %v1233, 0.0
        %vm1391 = vcmp.ge.f32.partialorder %v1235, 0.0
        %vm1392 = vcmp.ge.f32.partialorder %v1237, 0.0
        %vm1393 = vcmp.ge.f32.partialorder %v1241, 0.0
        %vm1394 = vcmp.ge.f32.partialorder %v1243, 0.0
        %vm1395 = vcmp.ge.f32.partialorder %v1245, 0.0
        %vm1396 = vcmp.ge.f32.partialorder %v1247, 0.0
        %vm1397 = vcmp.ge.f32.partialorder %v1251, 0.0
        %vm1398 = vcmp.ge.f32.partialorder %v1253, 0.0
        %vm1399 = vcmp.ge.f32.partialorder %v1255, 0.0
        %vm1400 = vcmp.ge.f32.partialorder %v1257, 0.0
        %vm1401 = vcmp.ge.f32.partialorder %v1261, 0.0
        %vm1402 = vcmp.ge.f32.partialorder %v1263, 0.0
        %vm1403 = vcmp.ge.f32.partialorder %v1265, 0.0
        %vm1404 = vcmp.ge.f32.partialorder %v1267, 0.0
        %vm1405 = vcmp.ge.f32.partialorder %v1271, 0.0
        %vm1406 = vcmp.ge.f32.partialorder %v1273, 0.0
        %vm1407 = vcmp.ge.f32.partialorder %v1275, 0.0
        %vm1408 = vcmp.ge.f32.partialorder %v1277, 0.0
        %vm1409 = vcmp.ge.f32.partialorder %v1281, 0.0
        %vm1410 = vcmp.ge.f32.partialorder %v1283, 0.0
        %vm1411 = vcmp.ge.f32.partialorder %v1285, 0.0
        %vm1412 = vcmp.ge.f32.partialorder %v1287, 0.0
        %vm1413 = vcmp.ge.f32.partialorder %v1291, 0.0
        %vm1414 = vcmp.ge.f32.partialorder %v1293, 0.0
        %vm1415 = vcmp.ge.f32.partialorder %v1295, 0.0
        %vm1416 = vcmp.ge.f32.partialorder %v1297, 0.0
        %vm1417 = vcmp.ge.f32.partialorder %v1301, 0.0
        %vm1418 = vcmp.ge.f32.partialorder %v1303, 0.0
        %vm1419 = vcmp.ge.f32.partialorder %v1305, 0.0
        %vm1420 = vcmp.ge.f32.partialorder %v1307, 0.0
        %vm1421 = vcmp.ge.f32.partialorder %v1311, 0.0
        %vm1422 = vcmp.ge.f32.partialorder %v1313, 0.0
        %vm1423 = vcmp.ge.f32.partialorder %v1315, 0.0
        %vm1424 = vcmp.ge.f32.partialorder %v1317, 0.0
        %vm1425 = vcmp.ge.f32.partialorder %v1321, 0.0
        %vm1426 = vcmp.ge.f32.partialorder %v1323, 0.0
        %vm1427 = vcmp.ge.f32.partialorder %v1325, 0.0
        %vm1428 = vcmp.ge.f32.partialorder %v1327, 0.0
        %vm1429 = vcmp.ge.f32.partialorder %v1331, 0.0
        %vm1430 = vcmp.ge.f32.partialorder %v1333, 0.0
        %vm1431 = vcmp.ge.f32.partialorder %v1335, 0.0
        %vm1432 = vcmp.ge.f32.partialorder %v1337, 0.0
        %vm1433 = vcmp.ge.f32.partialorder %v1341, 0.0
        %vm1434 = vcmp.ge.f32.partialorder %v1343, 0.0
        %vm1435 = vcmp.ge.f32.partialorder %v1345, 0.0
        %vm1436 = vcmp.ge.f32.partialorder %v1347, 0.0
        %vm1437 = vcmp.ge.f32.partialorder %v1351, 0.0
        %vm1438 = vcmp.ge.f32.partialorder %v1353, 0.0
        %vm1439 = vcmp.ge.f32.partialorder %v1355, 0.0
        %vm1440 = vcmp.ge.f32.partialorder %v1357, 0.0
        %vm1441 = vcmp.ge.f32.partialorder %v1361, 0.0
        %vm1442 = vcmp.ge.f32.partialorder %v1363, 0.0
        %vm1443 = vcmp.ge.f32.partialorder %v1365, 0.0
        %vm1444 = vcmp.ge.f32.partialorder %v1367, 0.0
        %vm1445 = vcmp.ge.f32.partialorder %v1371, 0.0
        %vm1446 = vcmp.ge.f32.partialorder %v1373, 0.0
        %vm1447 = vcmp.ge.f32.partialorder %v1375, 0.0
        %vm1448 = vcmp.ge.f32.partialorder %v1377, 0.0
        %vm1449 = vcmp.ge.f32.partialorder %v1381, 0.0
        %vm1450 = vcmp.ge.f32.partialorder %v1383, 0.0
        %vm1451 = vcmp.ge.f32.partialorder %v1385, 0.0
        %vm1452 = vcmp.ge.f32.partialorder %v1387, 0.0
        %v1453 = vmul.f32 %v1231, 0.1
        %v1454 = vmul.f32 %v1233, 0.1
        %v1455 = vmul.f32 %v1235, 0.1
        %v1456 = vmul.f32 %v1237, 0.1
        %v1457 = vmul.f32 %v1241, 0.1
        %v1458 = vmul.f32 %v1243, 0.1
        %v1459 = vmul.f32 %v1245, 0.1
        %v1460 = vmul.f32 %v1247, 0.1
        %v1461 = vmul.f32 %v1251, 0.1
        %v1462 = vmul.f32 %v1253, 0.1
        %v1463 = vmul.f32 %v1255, 0.1
        %v1464 = vmul.f32 %v1257, 0.1
        %v1465 = vmul.f32 %v1261, 0.1
        %v1466 = vmul.f32 %v1263, 0.1
        %v1467 = vmul.f32 %v1265, 0.1
        %v1468 = vmul.f32 %v1267, 0.1
        %v1469 = vmul.f32 %v1271, 0.1
        %v1470 = vmul.f32 %v1273, 0.1
        %v1471 = vmul.f32 %v1275, 0.1
        %v1472 = vmul.f32 %v1277, 0.1
        %v1473 = vmul.f32 %v1281, 0.1
        %v1474 = vmul.f32 %v1283, 0.1
        %v1475 = vmul.f32 %v1285, 0.1
        %v1476 = vmul.f32 %v1287, 0.1
        %v1477 = vmul.f32 %v1291, 0.1
        %v1478 = vmul.f32 %v1293, 0.1
        %v1479 = vmul.f32 %v1295, 0.1
        %v1480 = vmul.f32 %v1297, 0.1
        %v1481 = vmul.f32 %v1301, 0.1
        %v1482 = vmul.f32 %v1303, 0.1
        %v1483 = vmul.f32 %v1305, 0.1
        %v1484 = vmul.f32 %v1307, 0.1
        %v1485 = vmul.f32 %v1311, 0.1
        %v1486 = vmul.f32 %v1313, 0.1
        %v1487 = vmul.f32 %v1315, 0.1
        %v1488 = vmul.f32 %v1317, 0.1
        %v1489 = vmul.f32 %v1321, 0.1
        %v1490 = vmul.f32 %v1323, 0.1
        %v1491 = vmul.f32 %v1325, 0.1
        %v1492 = vmul.f32 %v1327, 0.1
        %v1493 = vmul.f32 %v1331, 0.1
        %v1494 = vmul.f32 %v1333, 0.1
        %v1495 = vmul.f32 %v1335, 0.1
        %v1496 = vmul.f32 %v1337, 0.1
        %v1497 = vmul.f32 %v1341, 0.1
        %v1498 = vmul.f32 %v1343, 0.1
        %v1499 = vmul.f32 %v1345, 0.1
        %v1500 = vmul.f32 %v1347, 0.1
        %v1501 = vmul.f32 %v1351, 0.1
        %v1502 = vmul.f32 %v1353, 0.1
        %v1503 = vmul.f32 %v1355, 0.1
        %v1504 = vmul.f32 %v1357, 0.1
        %v1505 = vmul.f32 %v1361, 0.1
        %v1506 = vmul.f32 %v1363, 0.1
        %v1507 = vmul.f32 %v1365, 0.1
        %v1508 = vmul.f32 %v1367, 0.1
        %v1509 = vmul.f32 %v1371, 0.1
        %v1510 = vmul.f32 %v1373, 0.1
        %v1511 = vmul.f32 %v1375, 0.1
        %v1512 = vmul.f32 %v1377, 0.1
        %v1513 = vmul.f32 %v1381, 0.1
        %v1514 = vmul.f32 %v1383, 0.1
        %v1515 = vmul.f32 %v1385, 0.1
        %v1516 = vmul.f32 %v1387, 0.1
        %v1517 = vsel %vm1389, %v1231, %v1453
        %v1518 = vsel %vm1390, %v1233, %v1454
        %v1519 = vsel %vm1391, %v1235, %v1455
        %v1520 = vsel %vm1392, %v1237, %v1456
        %v1521 = vsel %vm1393, %v1241, %v1457
        %v1522 = vsel %vm1394, %v1243, %v1458
        %v1523 = vsel %vm1395, %v1245, %v1459
        %v1524 = vsel %vm1396, %v1247, %v1460
        %v1525 = vsel %vm1397, %v1251, %v1461
        %v1526 = vsel %vm1398, %v1253, %v1462
        %v1527 = vsel %vm1399, %v1255, %v1463
        %v1528 = vsel %vm1400, %v1257, %v1464
        %v1529 = vsel %vm1401, %v1261, %v1465
        %v1530 = vsel %vm1402, %v1263, %v1466
        %v1531 = vsel %vm1403, %v1265, %v1467
        %v1532 = vsel %vm1404, %v1267, %v1468
        %v1533 = vsel %vm1405, %v1271, %v1469
        %v1534 = vsel %vm1406, %v1273, %v1470
        %v1535 = vsel %vm1407, %v1275, %v1471
        %v1536 = vsel %vm1408, %v1277, %v1472
        %v1537 = vsel %vm1409, %v1281, %v1473
        %v1538 = vsel %vm1410, %v1283, %v1474
        %v1539 = vsel %vm1411, %v1285, %v1475
        %v1540 = vsel %vm1412, %v1287, %v1476
        %v1541 = vsel %vm1413, %v1291, %v1477
        %v1542 = vsel %vm1414, %v1293, %v1478
        %v1543 = vsel %vm1415, %v1295, %v1479
        %v1544 = vsel %vm1416, %v1297, %v1480
        %v1545 = vsel %vm1417, %v1301, %v1481
        %v1546 = vsel %vm1418, %v1303, %v1482
        %v1547 = vsel %vm1419, %v1305, %v1483
        %v1548 = vsel %vm1420, %v1307, %v1484
        %v1549 = vsel %vm1421, %v1311, %v1485
        %v1550 = vsel %vm1422, %v1313, %v1486
        %v1551 = vsel %vm1423, %v1315, %v1487
        %v1552 = vsel %vm1424, %v1317, %v1488
        %v1553 = vsel %vm1425, %v1321, %v1489
        %v1554 = vsel %vm1426, %v1323, %v1490
        %v1555 = vsel %vm1427, %v1325, %v1491
        %v1556 = vsel %vm1428, %v1327, %v1492
        %v1557 = vsel %vm1429, %v1331, %v1493
        %v1558 = vsel %vm1430, %v1333, %v1494
        %v1559 = vsel %vm1431, %v1335, %v1495
        %v1560 = vsel %vm1432, %v1337, %v1496
        %v1561 = vsel %vm1433, %v1341, %v1497
        %v1562 = vsel %vm1434, %v1343, %v1498
        %v1563 = vsel %vm1435, %v1345, %v1499
        %v1564 = vsel %vm1436, %v1347, %v1500
        %v1565 = vsel %vm1437, %v1351, %v1501
        %v1566 = vsel %vm1438, %v1353, %v1502
        %v1567 = vsel %vm1439, %v1355, %v1503
        %v1568 = vsel %vm1440, %v1357, %v1504
        %v1569 = vsel %vm1441, %v1361, %v1505
        %v1570 = vsel %vm1442, %v1363, %v1506
        %v1571 = vsel %vm1443, %v1365, %v1507
        %v1572 = vsel %vm1444, %v1367, %v1508
        %v1573 = vsel %vm1445, %v1371, %v1509
        %v1574 = vsel %vm1446, %v1373, %v1510
        %v1575 = vsel %vm1447, %v1375, %v1511
        %v1576 = vsel %vm1448, %v1377, %v1512
        %v1577 = vsel %vm1449, %v1381, %v1513
        %v1578 = vsel %vm1450, %v1383, %v1514
        %v1579 = vsel %vm1451, %v1385, %v1515
        %v1580 = vsel %vm1452, %v1387, %v1516
        %v1581 = vadd.f32 %v1517, %v275
        %v1582 = vadd.f32 %v1518, %v276
        %v1583 = vadd.f32 %v1519, %v277
        %v1584 = vadd.f32 %v1520, %v278
        %v1585 = vadd.f32 %v1521, %v279
        %v1586 = vadd.f32 %v1522, %v280
        %v1587 = vadd.f32 %v1523, %v281
        %v1588 = vadd.f32 %v1524, %v282
        %v1589 = vadd.f32 %v1525, %v283
        %v1590 = vadd.f32 %v1526, %v284
        %v1591 = vadd.f32 %v1527, %v285
        %v1592 = vadd.f32 %v1528, %v286
        %v1593 = vadd.f32 %v1529, %v287
        %v1594 = vadd.f32 %v1530, %v288
        %v1595 = vadd.f32 %v1531, %v289
        %v1596 = vadd.f32 %v1532, %v290
        %v1597 = vadd.f32 %v1533, %v291
        %v1598 = vadd.f32 %v1534, %v292
        %v1599 = vadd.f32 %v1535, %v293
        %v1600 = vadd.f32 %v1536, %v294
        %v1601 = vadd.f32 %v1537, %v295
        %v1602 = vadd.f32 %v1538, %v296
        %v1603 = vadd.f32 %v1539, %v297
        %v1604 = vadd.f32 %v1540, %v298
        %v1605 = vadd.f32 %v1541, %v299
        %v1606 = vadd.f32 %v1542, %v300
        %v1607 = vadd.f32 %v1543, %v301
        %v1608 = vadd.f32 %v1544, %v302
        %v1609 = vadd.f32 %v1545, %v303
        %v1610 = vadd.f32 %v1546, %v304
        %v1611 = vadd.f32 %v1547, %v305
        %v1612 = vadd.f32 %v1548, %v306
        %v1613 = vadd.f32 %v1549, %v307
        %v1614 = vadd.f32 %v1550, %v308
        %v1615 = vadd.f32 %v1551, %v309
        %v1616 = vadd.f32 %v1552, %v310
        %v1617 = vadd.f32 %v1553, %v311
        %v1618 = vadd.f32 %v1554, %v312
        %v1619 = vadd.f32 %v1555, %v313
        %v1620 = vadd.f32 %v1556, %v314
        %v1621 = vadd.f32 %v1557, %v315
        %v1622 = vadd.f32 %v1558, %v316
        %v1623 = vadd.f32 %v1559, %v317
        %v1624 = vadd.f32 %v1560, %v318
        %v1625 = vadd.f32 %v1561, %v319
        %v1626 = vadd.f32 %v1562, %v320
        %v1627 = vadd.f32 %v1563, %v321
        %v1628 = vadd.f32 %v1564, %v322
        %v1629 = vadd.f32 %v1565, %v323
        %v1630 = vadd.f32 %v1566, %v324
        %v1631 = vadd.f32 %v1567, %v325
        %v1632 = vadd.f32 %v1568, %v326
        %v1633 = vadd.f32 %v1569, %v327
        %v1634 = vadd.f32 %v1570, %v328
        %v1635 = vadd.f32 %v1571, %v329
        %v1636 = vadd.f32 %v1572, %v330
        %v1637 = vadd.f32 %v1573, %v331
        %v1638 = vadd.f32 %v1574, %v332
        %v1639 = vadd.f32 %v1575, %v333
        %v1640 = vadd.f32 %v1576, %v334
        %v1641 = vadd.f32 %v1577, %v335
        %v1642 = vadd.f32 %v1578, %v336
        %v1643 = vadd.f32 %v1579, %v337
        %v1644 = vadd.f32 %v1580, %v338
        %1645 = vst [vmem:[%s272] sm:$0xff] %v1581
        %1646 = vst [vmem:[%s272 + $0x8] sm:$0xff] %v1582
        %1647 = vst [vmem:[%s272 + $0x10] sm:$0xff] %v1583
        %1648 = vst [vmem:[%s272 + $0x18] sm:$0xff] %v1584
        %1649 = vst [vmem:[%s272 + $0x20] sm:$0xff] %v1585
        %1650 = vst [vmem:[%s272 + $0x28] sm:$0xff] %v1586
        %1651 = vst [vmem:[%s272 + $0x30] sm:$0xff] %v1587
        %1652 = vst [vmem:[%s272 + $0x38] sm:$0xff] %v1588
        %1653 = vst [vmem:[%s272 + $0x40] sm:$0xff] %v1589
        %1654 = vst [vmem:[%s272 + $0x48] sm:$0xff] %v1590
        %1655 = vst [vmem:[%s272 + $0x50] sm:$0xff] %v1591
        %1656 = vst [vmem:[%s272 + $0x58] sm:$0xff] %v1592
        %1657 = vst [vmem:[%s272 + $0x60] sm:$0xff] %v1593
        %1658 = vst [vmem:[%s272 + $0x68] sm:$0xff] %v1594
        %1659 = vst [vmem:[%s272 + $0x70] sm:$0xff] %v1595
        %1660 = vst [vmem:[%s272 + $0x78] sm:$0xff] %v1596
        %1661 = vst [vmem:[%s272 + $0x80] sm:$0xff] %v1597
        %1662 = vst [vmem:[%s272 + $0x88] sm:$0xff] %v1598
        %1663 = vst [vmem:[%s272 + $0x90] sm:$0xff] %v1599
        %1664 = vst [vmem:[%s272 + $0x98] sm:$0xff] %v1600
        %1665 = vst [vmem:[%s272 + $0xa0] sm:$0xff] %v1601
        %1666 = vst [vmem:[%s272 + $0xa8] sm:$0xff] %v1602
        %1667 = vst [vmem:[%s272 + $0xb0] sm:$0xff] %v1603
        %1668 = vst [vmem:[%s272 + $0xb8] sm:$0xff] %v1604
        %1669 = vst [vmem:[%s272 + $0xc0] sm:$0xff] %v1605
        %1670 = vst [vmem:[%s272 + $0xc8] sm:$0xff] %v1606
        %1671 = vst [vmem:[%s272 + $0xd0] sm:$0xff] %v1607
        %1672 = vst [vmem:[%s272 + $0xd8] sm:$0xff] %v1608
        %1673 = vst [vmem:[%s272 + $0xe0] sm:$0xff] %v1609
        %1674 = vst [vmem:[%s272 + $0xe8] sm:$0xff] %v1610
        %1675 = vst [vmem:[%s272 + $0xf0] sm:$0xff] %v1611
        %1676 = vst [vmem:[%s272 + $0xf8] sm:$0xff] %v1612
        %1677 = vst [vmem:[%s272 + $0x100] sm:$0xff] %v1613
        %1678 = vst [vmem:[%s272 + $0x108] sm:$0xff] %v1614
        %1679 = vst [vmem:[%s272 + $0x110] sm:$0xff] %v1615
        %1680 = vst [vmem:[%s272 + $0x118] sm:$0xff] %v1616
        %1681 = vst [vmem:[%s272 + $0x120] sm:$0xff] %v1617
        %1682 = vst [vmem:[%s272 + $0x128] sm:$0xff] %v1618
        %1683 = vst [vmem:[%s272 + $0x130] sm:$0xff] %v1619
        %1684 = vst [vmem:[%s272 + $0x138] sm:$0xff] %v1620
        %1685 = vst [vmem:[%s272 + $0x140] sm:$0xff] %v1621
        %1686 = vst [vmem:[%s272 + $0x148] sm:$0xff] %v1622
        %1687 = vst [vmem:[%s272 + $0x150] sm:$0xff] %v1623
        %1688 = vst [vmem:[%s272 + $0x158] sm:$0xff] %v1624
        %1689 = vst [vmem:[%s272 + $0x160] sm:$0xff] %v1625
        %1690 = vst [vmem:[%s272 + $0x168] sm:$0xff] %v1626
        %1691 = vst [vmem:[%s272 + $0x170] sm:$0xff] %v1627
        %1692 = vst [vmem:[%s272 + $0x178] sm:$0xff] %v1628
        %1693 = vst [vmem:[%s272 + $0x180] sm:$0xff] %v1629
        %1694 = vst [vmem:[%s272 + $0x188] sm:$0xff] %v1630
        %1695 = vst [vmem:[%s272 + $0x190] sm:$0xff] %v1631
        %1696 = vst [vmem:[%s272 + $0x198] sm:$0xff] %v1632
        %1697 = vst [vmem:[%s272 + $0x1a0] sm:$0xff] %v1633
        %1698 = vst [vmem:[%s272 + $0x1a8] sm:$0xff] %v1634
        %1699 = vst [vmem:[%s272 + $0x1b0] sm:$0xff] %v1635
        %1700 = vst [vmem:[%s272 + $0x1b8] sm:$0xff] %v1636
        %1701 = vst [vmem:[%s272 + $0x1c0] sm:$0xff] %v1637
        %1702 = vst [vmem:[%s272 + $0x1c8] sm:$0xff] %v1638
        %1703 = vst [vmem:[%s272 + $0x1d0] sm:$0xff] %v1639
        %1704 = vst [vmem:[%s272 + $0x1d8] sm:$0xff] %v1640
        %1705 = vst [vmem:[%s272 + $0x1e0] sm:$0xff] %v1641
        %1706 = vst [vmem:[%s272 + $0x1e8] sm:$0xff] %v1642
        %1707 = vst [vmem:[%s272 + $0x1f0] sm:$0xff] %v1643
        %1708 = vst [vmem:[%s272 + $0x1f8] sm:$0xff] %v1644
        %s1709 = sand.u32 %s141, 1
        %s1710 = scalar_lea.sflag [#allocation4], %s1709
        %s1711 = sand.u32 %s141, 1
        %s1712 = smul.addr %s1711, 512
        %s1713 = scalar_lea.vmem [#allocation8], %s1712
        // Predicated region
        $region53: #{tpu_custom_call.1} parent=39 // pred_check
          %p1714 = pneg %p151
        $region54: #{tpu_custom_call.1} parent=39 // pred_check_branch
          %1716 = sbr.rel (%p1714) target = $region56
        $region55: #{tpu_custom_call.1} parent=39 // pred_region
          %s1717 = smul.u32 32, %s23
          %s1719 = ssub.s32 8192, 8192
          %1720 = vsyncadd %s1710, %s1719
          %s1721 = smul.addr %s1717, 2
          %s1722 = smul.addr %s1721, 128
          %s1723 = scalar_lea.hbm %s5, %s1722
          %s1724 = sshll.u32 %s1713, 4
          %s1725 = int_to_ptr.vmem [resolvable:$true] %s1724
          %1730 = dma.vmem_to_hbm [thread:$0]  %s1725, 8192, %s1723, %s1710, 256, 256, 16
        $region56: #{tpu_custom_call.1} parent=39 // pred_fallthru
          _
      $region40: #{tpu_custom_call.1} parent=5 // pred_fallthru
        _
      %p1731 = scmp.le.s32.totalorder 2, %s18
      // Predicated region
      $region57: #{tpu_custom_call.1} parent=5 // pred_check
        %p1732 = pneg %p1731
      $region58: #{tpu_custom_call.1} parent=5 // pred_check_branch
        %1734 = sbr.rel (%p1732) target = $region60
      $region59: #{tpu_custom_call.1} parent=5 // pred_region
        %s1735 = ssub.s32 %s18, 2
        // Predicated region
        $region61: #{tpu_custom_call.1} parent=59 // pred_check
          %p1736 = pneg %p157
        $region62: #{tpu_custom_call.1} parent=59 // pred_check_branch
          %1738 = sbr.rel (%p1736) target = $region64
        $region63: #{tpu_custom_call.1} parent=59 // pred_region
          %s1739 = sand.u32 %s142, 1
          %s1740 = scalar_lea.sflag [#allocation4], %s1739
          %s1741 = sand.u32 %s142, 1
          %s1742 = smul.addr %s1741, 512
          %s1743 = scalar_lea.vmem [#allocation8], %s1742
          %1744 = dma.done %s1740, 8192
        $region64: #{tpu_custom_call.1} parent=59 // pred_fallthru
          _
      $region60: #{tpu_custom_call.1} parent=5 // pred_fallthru
        _
    $region6: #{tpu_custom_call.1} parent=1 // loop_footer
      %s22 = sadd.s32 1, %s18
    $region7: #{tpu_custom_call.1} parent=1 // loop_footer_branch
      %17 = sbr.rel target = $region3
    $region8: #{tpu_custom_call.1} parent=1 // loop_exit
      _
    %1745 = vsyncpa [#allocation3], 1
    %s1746 = scalar_lea.sflag [#allocation3], 1
    %1747 = vsyncpa %s1746, 1
    %1748 = vsyncpa [#allocation6], 1
    %1749 = vsyncpa [#allocation4], 1
    %s1750 = scalar_lea.sflag [#allocation4], 1
    %1751 = vsyncpa %s1750, 1

</llo_original>
